<compile_context>
chip_gen: v6e
topology: v6e:2x2x1
jax: 0.10.0
libtpu: 0.0.40
codegen_flags: <defaults>
</compile_context>

<pallas_src>
import functools

import jax
import jax.numpy as jnp
from jax.experimental import pallas as pl
from jax.experimental.pallas import tpu as pltpu


def _round_up(x, m):
    return (x + m - 1) // m * m


# --------------------------------- kernel ---------------------------------------
def _gru_cell_kernel(g_ref, comb_ref, wg_ref, bg_ref, wu_ref, bu_ref, out_ref,
                     *, K, Np, Hp, Bk, Bb):
    """One sub-batch of Bb graph signals per grid step; G / weights VMEM-resident.

    combined layout (lanes): [ h (Hp) | x (Cp) ]  -> Bk = Hp + Cp lanes
    gate output layout     : [ z (Hp) | r-slab (Bk, column-aligned with combined) ]
    """
    f32 = jnp.float32
    R = Bb * Np
    wg_cols = Hp + Bk

    g = g_ref[...]                                   # [K*Np, Np]   (compute dtype)
    combined = comb_ref[...]                         # [R, Bk]      (zero padded)
    cdt = g.dtype                                    # MXU input dtype (bf16 or f32)

    # ---- gate GCN: supports, one fused [K*Np,Np]@[Np,Bk] MXU call per element ---
    s_gate = [jnp.dot(g, combined[b * Np:(b + 1) * Np, :],
                      preferred_element_type=f32) for b in range(Bb)]

    # projection: per hop, stack the sub-batch rows -> M = Bb*Np; bias in the init.
    acc_g = jnp.broadcast_to(bg_ref[...], (R, wg_cols)).astype(f32)
    for k in range(K):                               # static unroll over hops
        sk = jnp.concatenate(
            [s_gate[b][k * Np:(k + 1) * Np, :] for b in range(Bb)], axis=0)
        acc_g = acc_g + jnp.dot(sk.astype(cdt), wg_ref[k * Bk:(k + 1) * Bk, :],
                                preferred_element_type=f32)

    z = jax.nn.sigmoid(acc_g[:, :Hp])                # [R, Hp]
    r_slab = jax.nn.sigmoid(acc_g[:, Hp:])           # [R, Bk], aligned w/ combined

    # ---- candidate = [ r*h | x ]: r on the h columns, 1 on the x columns --------
    lane = jax.lax.broadcasted_iota(jnp.int32, (R, Bk), 1)
    r_ext = jnp.where(lane < Hp, r_slab, 1.0)
    candidate = (combined.astype(f32) * r_ext).astype(cdt)

    # ---- update GCN --------------------------------------------------------------
    s_upd = [jnp.dot(g, candidate[b * Np:(b + 1) * Np, :],
                     preferred_element_type=f32) for b in range(Bb)]
    acc_u = jnp.broadcast_to(bu_ref[...], (R, Hp)).astype(f32)
    for k in range(K):
        sk = jnp.concatenate(
            [s_upd[b][k * Np:(k + 1) * Np, :] for b in range(Bb)], axis=0)
        acc_u = acc_u + jnp.dot(sk.astype(cdt), wu_ref[k * Bk:(k + 1) * Bk, :],
                                preferred_element_type=f32)
    n = jnp.tanh(acc_u)                              # [R, Hp]

    # ---- GRU blend; h is the aligned lane slice of combined (no extra stream) ----
    h_pre = combined[:, :Hp].astype(f32)
    h_t = z * n + (1.0 - z) * h_pre                  # padded cols come out exactly 0
    out_ref[...] = h_t.astype(out_ref.dtype)


# --------------------------- parameter packing (hoistable) -----------------------
def prepare_gru_cell_params(G, W_gate, b_gate, W_update, b_update,
                            dim_in, dim_hidden, *, param_dtype=jnp.bfloat16):
    """Pack G / weights / biases into the padded, MXU-friendly layout.

    Call once per sequence (the packing is constant layout plumbing); only the
    activations change per timestep.
    """
    K, N, _ = G.shape
    C, H = dim_in, dim_hidden
    CH = C + H
    assert W_gate.shape == (K * CH, 2 * H)
    assert b_gate.shape == (2 * H,)
    assert W_update.shape == (K * CH, H)
    assert b_update.shape == (H,)

    Np = _round_up(N, 16)        # sublane tile (covers f32 (8) and packed bf16 (16))
    Cp = _round_up(C, 16)
    Hp = _round_up(H, 128)       # lane tile -> lane-dense output store
    Bk = Hp + Cp                 # combined channel block: [h | x]
    wg_cols = Hp + Bk            # gate output: [z | r-slab]

    # G padded per hop to Np x Np and stacked hop-major -> [K*Np, Np].
    G_pad = jnp.zeros((K, Np, Np), jnp.float32).at[:, :N, :N].set(
        G.astype(jnp.float32))
    G2 = G_pad.reshape(K * Np, Np).astype(param_dtype)

    Wg = W_gate.astype(jnp.float32)
    Wu = W_update.astype(jnp.float32)
    Wg_pad = jnp.zeros((K * Bk, wg_cols), jnp.float32)
    Wu_pad = jnp.zeros((K * Bk, Hp), jnp.float32)
    for k in range(K):
        wx_g = Wg[k * CH:k * CH + C, :]              # x-channel rows, [C, 2H]
        wh_g = Wg[k * CH + C:(k + 1) * CH, :]        # h-channel rows, [H, 2H]
        wx_u = Wu[k * CH:k * CH + C, :]
        wh_u = Wu[k * CH + C:(k + 1) * CH, :]
        r0 = k * Bk
        # rows: h channels first (combined = [h | x]); cols: z -> [0:H),
        # r -> [Hp:Hp+H) so the r preactivation lands column-aligned with h.
        Wg_pad = Wg_pad.at[r0:r0 + H, 0:H].set(wh_g[:, :H])
        Wg_pad = Wg_pad.at[r0:r0 + H, Hp:Hp + H].set(wh_g[:, H:])
        Wg_pad = Wg_pad.at[r0 + Hp:r0 + Hp + C, 0:H].set(wx_g[:, :H])
        Wg_pad = Wg_pad.at[r0 + Hp:r0 + Hp + C, Hp:Hp + H].set(wx_g[:, H:])
        Wu_pad = Wu_pad.at[r0:r0 + H, 0:H].set(wh_u)
        Wu_pad = Wu_pad.at[r0 + Hp:r0 + Hp + C, 0:H].set(wx_u)

    # biases stay f32: they seed the f32 accumulators.
    bg_pad = jnp.zeros((1, wg_cols), jnp.float32)
    bg_pad = bg_pad.at[0, 0:H].set(b_gate[:H].astype(jnp.float32))
    bg_pad = bg_pad.at[0, Hp:Hp + H].set(b_gate[H:].astype(jnp.float32))
    bu_pad = jnp.zeros((1, Hp), jnp.float32).at[0, 0:H].set(
        b_update.astype(jnp.float32))

    geom = dict(K=K, N=N, C=C, H=H, Np=Np, Cp=Cp, Hp=Hp, Bk=Bk,
                wg_cols=wg_cols, param_dtype=param_dtype)
    return dict(G2=G2, Wg=Wg_pad.astype(param_dtype), bg=bg_pad,
                Wu=Wu_pad.astype(param_dtype), bu=bu_pad, geom=geom)


# ------------------------------- per-timestep apply ------------------------------
def gru_cell_apply(params, x_t, h_pre, *, batch_block=8):
    geom = params["geom"]
    K, N, C, H = geom["K"], geom["N"], geom["C"], geom["H"]
    Np, Hp, Bk, wg_cols = geom["Np"], geom["Hp"], geom["Bk"], geom["wg_cols"]
    pdt = geom["param_dtype"]

    B = x_t.shape[0]
    assert x_t.shape == (B, N, C) and h_pre.shape == (B, N, H)
    out_dtype = h_pre.dtype

    Bb = max(1, min(batch_block, B))     # v5e: keep Bb*Np a multiple of 128 if possible
    Bp = _round_up(B, Bb)
    nsteps = Bp // Bb
    R = Bb * Np

    # activations: zero-pad into the packed [h | x] layout and cast once.
    comb = jnp.zeros((Bp, Np, Bk), pdt)
    comb = comb.at[:B, :N, :H].set(h_pre.astype(pdt))
    comb = comb.at[:B, :N, Hp:Hp + C].set(x_t.astype(pdt))
    comb = comb.reshape(Bp * Np, Bk)

    # explicit VMEM budget: resident params (x2 buffering) + streamed blocks + temps
    pbytes = jnp.dtype(pdt).itemsize
    obytes = jnp.dtype(out_dtype).itemsize
    resident = (K * Np * Np + K * Bk * wg_cols + K * Bk * Hp) * pbytes \
        + (wg_cols + Hp) * 4
    stream = R * Bk * pbytes + R * Hp * obytes
    temps = 4 * (2 * Bb * K * Np * Bk + R * wg_cols + 2 * R * Bk + 3 * R * Hp)
    est = 2 * resident + 2 * stream + temps
    vmem_limit = int(min(max(4 * est, 16 * 2**20), 64 * 2**20))

    kernel = functools.partial(_gru_cell_kernel, K=K, Np=Np, Hp=Hp, Bk=Bk, Bb=Bb)

    out_pad = pl.pallas_call(
        kernel,
        out_shape=jax.ShapeDtypeStruct((Bp * Np, Hp), out_dtype),
        grid_spec=pltpu.PrefetchScalarGridSpec(
            num_scalar_prefetch=0,
            grid=(nsteps,),
            in_specs=[
                # constant index maps -> DMA'd once, resident across the batch grid
                pl.BlockSpec((K * Np, Np), lambda i: (0, 0)),        # G2
                pl.BlockSpec((R, Bk), lambda i: (i, 0)),             # [h | x] slab
                pl.BlockSpec((K * Bk, wg_cols), lambda i: (0, 0)),   # gate W
                pl.BlockSpec((1, wg_cols), lambda i: (0, 0)),        # gate b (f32)
                pl.BlockSpec((K * Bk, Hp), lambda i: (0, 0)),        # update W
                pl.BlockSpec((1, Hp), lambda i: (0, 0)),             # update b (f32)
            ],
            out_specs=pl.BlockSpec((R, Hp), lambda i: (i, 0)),
        ),
        compiler_params=pltpu.CompilerParams(
            dimension_semantics=("parallel",),
            vmem_limit_bytes=vmem_limit),
    )(params["G2"], comb, params["Wg"], params["bg"], params["Wu"], params["bu"])

    return out_pad.reshape(Bp, Np, Hp)[:B, :N, :H]


def gru_cell_forward(G, x_t, h_pre, W_gate, b_gate, W_update, b_update,
                     *, param_dtype=jnp.bfloat16, batch_block=8):
    """Convenience wrapper: pack params + apply (for scans, hoist the packing)."""
    C, H = x_t.shape[-1], h_pre.shape[-1]
    params = prepare_gru_cell_params(G, W_gate, b_gate, W_update, b_update,
                                     C, H, param_dtype=param_dtype)
    return gru_cell_apply(params, x_t, h_pre, batch_block=batch_block)


# ---------------------------- pure-JAX reference --------------------------------
def _gcn_reference(G, x, W, b):
    K = G.shape[0]
    supports = [jnp.einsum('ij,bjp->bip', G[k], x) for k in range(K)]
    support_cat = jnp.concatenate(supports, axis=-1)
    return jnp.einsum('bip,pq->biq', support_cat, W) + b


def gru_cell_reference(G, x_t, h_pre, W_gate, b_gate, W_update, b_update):
    H = h_pre.shape[-1]
    combined = jnp.concatenate([x_t, h_pre], axis=-1)
    z_r = jax.nn.sigmoid(_gcn_reference(G, combined, W_gate, b_gate))
    z, r = z_r[..., :H], z_r[..., H:]
    candidate = jnp.concatenate([x_t, r * h_pre], axis=-1)
    n = jnp.tanh(_gcn_reference(G, candidate, W_update, b_update))
    return z * n + (1.0 - z) * h_pre


if __name__ == "__main__":
    # Shapes consistent with GRUCell(num_nodes=16, dim_in=4, dim_hidden=32, cheb_k=3)
    B, N = 2, 16
    dim_in, dim_hidden, cheb_k = 4, 32, 3
    CH = dim_in + dim_hidden

    key = jax.random.PRNGKey(0)
    kG, kx, kh, kwg, kwu, kbg, kbu = jax.random.split(key, 7)

    G = jax.random.normal(kG, (cheb_k, N, N), dtype=jnp.float32)
    x_t = jax.random.normal(kx, (B, N, dim_in), dtype=jnp.float32)
    h_pre = jax.random.normal(kh, (B, N, dim_hidden), dtype=jnp.float32)

    def xavier(k, fan_in, fan_out):
        std = (2.0 / (fan_in + fan_out)) ** 0.5
        return std * jax.random.normal(k, (fan_in, fan_out), dtype=jnp.float32)

    W_gate = xavier(kwg, cheb_k * CH, 2 * dim_hidden)
    W_update = xavier(kwu, cheb_k * CH, dim_hidden)
    b_gate = 0.1 * jax.random.normal(kbg, (2 * dim_hidden,), dtype=jnp.float32)
    b_update = 0.1 * jax.random.normal(kbu, (dim_hidden,), dtype=jnp.float32)

    ref = gru_cell_reference(G, x_t, h_pre, W_gate, b_gate, W_update, b_update)

    # f32 path: faithful to the PyTorch module, tight tolerance.
    p32 = prepare_gru_cell_params(G, W_gate, b_gate, W_update, b_update,
                                  dim_in, dim_hidden, param_dtype=jnp.float32)
    h32 = jax.block_until_ready(gru_cell_apply(p32, x_t, h_pre, batch_block=8))
    assert h32.shape == (B, N, dim_hidden)
    assert jnp.allclose(h32, ref, atol=1e-3, rtol=1e-3), "f32 mismatch vs reference"

    # bf16 path (production default): half the DMA bytes, native MXU rate on
    # v6e/v7x; f32 accumulation + f32 elementwise -> bf16-level tolerance.
    p16 = prepare_gru_cell_params(G, W_gate, b_gate, W_update, b_update,
                                  dim_in, dim_hidden, param_dtype=jnp.bfloat16)
    h16 = jax.block_until_ready(gru_cell_apply(p16, x_t, h_pre, batch_block=8))
    assert h16.shape == (B, N, dim_hidden)
    assert jnp.allclose(h16.astype(jnp.float32), ref, atol=5e-2, rtol=5e-2), \
        "bf16 mismatch vs reference"

    print("KERNEL_OK")
</pallas_src>

<mosaic_0001>
module attributes {stable_mosaic.version = 11 : i64} {
  func.func @_gru_cell_kernel(%arg0: i32, %arg1: memref<48x16xf32, #tpu.memory_space<vmem>>, %arg2: memref<32x144xf32, #tpu.memory_space<vmem>>, %arg3: memref<432x272xf32, #tpu.memory_space<vmem>>, %arg4: memref<1x272xf32, #tpu.memory_space<vmem>>, %arg5: memref<432x128xf32, #tpu.memory_space<vmem>>, %arg6: memref<1x128xf32, #tpu.memory_space<vmem>>, %arg7: memref<32x128xf32, #tpu.memory_space<vmem>>) attributes {dimension_semantics = [#tpu.dimension_semantics<parallel>], iteration_bounds = array<i64: 1>, scalar_prefetch = 0 : i64, scratch_operands = 0 : i64, tpu.core_type = #tpu.core_type<tc>, window_params = [{pipeline_mode = #tpu.pipeline_mode<synchronous>, transform_indices = @transform_0, window_bounds = array<i64: 48, 16>}, {transform_indices = @transform_1, window_bounds = array<i64: 32, 144>}, {pipeline_mode = #tpu.pipeline_mode<synchronous>, transform_indices = @transform_2, window_bounds = array<i64: 432, 272>}, {pipeline_mode = #tpu.pipeline_mode<synchronous>, transform_indices = @transform_3, window_bounds = array<i64: 1, 272>}, {pipeline_mode = #tpu.pipeline_mode<synchronous>, transform_indices = @transform_4, window_bounds = array<i64: 432, 128>}, {pipeline_mode = #tpu.pipeline_mode<synchronous>, transform_indices = @transform_5, window_bounds = array<i64: 1, 128>}, {transform_indices = @transform_6, window_bounds = array<i64: 32, 128>}]} {
    %c0 = arith.constant 0 : index
    %c0_0 = arith.constant 0 : index
    %0 = vector.load %arg1[%c0, %c0_0] : memref<48x16xf32, #tpu.memory_space<vmem>>, vector<48x16xf32>
    %c0_1 = arith.constant 0 : index
    %c0_2 = arith.constant 0 : index
    %1 = vector.load %arg2[%c0_1, %c0_2] : memref<32x144xf32, #tpu.memory_space<vmem>>, vector<32x144xf32>
    %2 = vector.extract_strided_slice %1 {offsets = [0, 0], sizes = [16, 144], strides = [1, 1]} : vector<32x144xf32> to vector<16x144xf32>
    %cst = arith.constant dense<0.000000e+00> : vector<48x144xf32>
    %3 = tpu.matmul %0, %2, %cst {dimension_numbers = #tpu.dot_dimension_numbers<[1], [0], [0], [1], [0, 0, 1, 1], [], []>} : vector<48x16xf32>, vector<16x144xf32>, vector<48x144xf32> -> vector<48x144xf32>
    %4 = vector.extract_strided_slice %1 {offsets = [16, 0], sizes = [16, 144], strides = [1, 1]} : vector<32x144xf32> to vector<16x144xf32>
    %cst_3 = arith.constant dense<0.000000e+00> : vector<48x144xf32>
    %5 = tpu.matmul %0, %4, %cst_3 {dimension_numbers = #tpu.dot_dimension_numbers<[1], [0], [0], [1], [0, 0, 1, 1], [], []>} : vector<48x16xf32>, vector<16x144xf32>, vector<48x144xf32> -> vector<48x144xf32>
    %c0_4 = arith.constant 0 : index
    %c0_5 = arith.constant 0 : index
    %6 = vector.load %arg4[%c0_4, %c0_5] : memref<1x272xf32, #tpu.memory_space<vmem>>, vector<1x272xf32>
    %7 = vector.shape_cast %6 : vector<1x272xf32> to vector<1x272xf32>
    %8 = vector.broadcast %7 : vector<1x272xf32> to vector<32x272xf32>
    %9 = vector.extract_strided_slice %3 {offsets = [0, 0], sizes = [16, 144], strides = [1, 1]} : vector<48x144xf32> to vector<16x144xf32>
    %10 = vector.extract_strided_slice %5 {offsets = [0, 0], sizes = [16, 144], strides = [1, 1]} : vector<48x144xf32> to vector<16x144xf32>
    %11 = tpu.concatenate %9, %10 in 0 : vector<16x144xf32>, vector<16x144xf32> -> vector<32x144xf32>
    %c0_6 = arith.constant 0 : index
    %c0_7 = arith.constant 0 : index
    %12 = vector.load %arg3[%c0_6, %c0_7] : memref<432x272xf32, #tpu.memory_space<vmem>>, vector<144x272xf32>
    %cst_8 = arith.constant dense<0.000000e+00> : vector<32x272xf32>
    %13 = tpu.matmul %11, %12, %cst_8 {dimension_numbers = #tpu.dot_dimension_numbers<[1], [0], [0], [1], [0, 0, 1, 1], [], []>} : vector<32x144xf32>, vector<144x272xf32>, vector<32x272xf32> -> vector<32x272xf32>
    %14 = arith.addf %8, %13 : vector<32x272xf32>
    %15 = vector.extract_strided_slice %3 {offsets = [16, 0], sizes = [16, 144], strides = [1, 1]} : vector<48x144xf32> to vector<16x144xf32>
    %16 = vector.extract_strided_slice %5 {offsets = [16, 0], sizes = [16, 144], strides = [1, 1]} : vector<48x144xf32> to vector<16x144xf32>
    %17 = tpu.concatenate %15, %16 in 0 : vector<16x144xf32>, vector<16x144xf32> -> vector<32x144xf32>
    %c144 = arith.constant 144 : index
    %c0_9 = arith.constant 0 : index
    %18 = vector.load %arg3[%c144, %c0_9] : memref<432x272xf32, #tpu.memory_space<vmem>>, vector<144x272xf32>
    %cst_10 = arith.constant dense<0.000000e+00> : vector<32x272xf32>
    %19 = tpu.matmul %17, %18, %cst_10 {dimension_numbers = #tpu.dot_dimension_numbers<[1], [0], [0], [1], [0, 0, 1, 1], [], []>} : vector<32x144xf32>, vector<144x272xf32>, vector<32x272xf32> -> vector<32x272xf32>
    %20 = arith.addf %14, %19 : vector<32x272xf32>
    %21 = vector.extract_strided_slice %3 {offsets = [32, 0], sizes = [16, 144], strides = [1, 1]} : vector<48x144xf32> to vector<16x144xf32>
    %22 = vector.extract_strided_slice %5 {offsets = [32, 0], sizes = [16, 144], strides = [1, 1]} : vector<48x144xf32> to vector<16x144xf32>
    %23 = tpu.concatenate %21, %22 in 0 : vector<16x144xf32>, vector<16x144xf32> -> vector<32x144xf32>
    %c288 = arith.constant 288 : index
    %c0_11 = arith.constant 0 : index
    %24 = vector.load %arg3[%c288, %c0_11] : memref<432x272xf32, #tpu.memory_space<vmem>>, vector<144x272xf32>
    %cst_12 = arith.constant dense<0.000000e+00> : vector<32x272xf32>
    %25 = tpu.matmul %23, %24, %cst_12 {dimension_numbers = #tpu.dot_dimension_numbers<[1], [0], [0], [1], [0, 0, 1, 1], [], []>} : vector<32x144xf32>, vector<144x272xf32>, vector<32x272xf32> -> vector<32x272xf32>
    %26 = arith.addf %20, %25 : vector<32x272xf32>
    %27 = vector.extract_strided_slice %26 {offsets = [0, 0], sizes = [32, 128], strides = [1, 1]} : vector<32x272xf32> to vector<32x128xf32>
    %28 = arith.negf %27 : vector<32x128xf32>
    %29 = math.exp %28 : vector<32x128xf32>
    %cst_13 = arith.constant 1.000000e+00 : f32
    %30 = vector.broadcast %cst_13 : f32 to vector<32x128xf32>
    %31 = arith.addf %30, %29 : vector<32x128xf32>
    %32 = arith.divf %30, %31 : vector<32x128xf32>
    %33 = vector.extract_strided_slice %26 {offsets = [0, 128], sizes = [32, 144], strides = [1, 1]} : vector<32x272xf32> to vector<32x144xf32>
    %34 = arith.negf %33 : vector<32x144xf32>
    %35 = math.exp %34 : vector<32x144xf32>
    %cst_14 = arith.constant 1.000000e+00 : f32
    %36 = vector.broadcast %cst_14 : f32 to vector<32x144xf32>
    %37 = arith.addf %36, %35 : vector<32x144xf32>
    %38 = arith.divf %36, %37 : vector<32x144xf32>
    %39 = tpu.iota {dimensions = array<i32: 1>} : vector<32x144xi32>
    %c128_i32 = arith.constant 128 : i32
    %40 = vector.broadcast %c128_i32 : i32 to vector<32x144xi32>
    %41 = arith.cmpi slt, %39, %40 : vector<32x144xi32>
    %cst_15 = arith.constant 1.000000e+00 : f32
    %42 = vector.broadcast %cst_15 : f32 to vector<32x144xf32>
    %43 = arith.select %41, %38, %42 : vector<32x144xi1>, vector<32x144xf32>
    %44 = arith.mulf %1, %43 : vector<32x144xf32>
    %45 = vector.extract_strided_slice %44 {offsets = [0, 0], sizes = [16, 144], strides = [1, 1]} : vector<32x144xf32> to vector<16x144xf32>
    %cst_16 = arith.constant dense<0.000000e+00> : vector<48x144xf32>
    %46 = tpu.matmul %0, %45, %cst_16 {dimension_numbers = #tpu.dot_dimension_numbers<[1], [0], [0], [1], [0, 0, 1, 1], [], []>} : vector<48x16xf32>, vector<16x144xf32>, vector<48x144xf32> -> vector<48x144xf32>
    %47 = vector.extract_strided_slice %44 {offsets = [16, 0], sizes = [16, 144], strides = [1, 1]} : vector<32x144xf32> to vector<16x144xf32>
    %cst_17 = arith.constant dense<0.000000e+00> : vector<48x144xf32>
    %48 = tpu.matmul %0, %47, %cst_17 {dimension_numbers = #tpu.dot_dimension_numbers<[1], [0], [0], [1], [0, 0, 1, 1], [], []>} : vector<48x16xf32>, vector<16x144xf32>, vector<48x144xf32> -> vector<48x144xf32>
    %c0_18 = arith.constant 0 : index
    %c0_19 = arith.constant 0 : index
    %49 = vector.load %arg6[%c0_18, %c0_19] : memref<1x128xf32, #tpu.memory_space<vmem>>, vector<1x128xf32>
    %50 = vector.shape_cast %49 : vector<1x128xf32> to vector<1x128xf32>
    %51 = vector.broadcast %50 : vector<1x128xf32> to vector<32x128xf32>
    %52 = vector.extract_strided_slice %46 {offsets = [0, 0], sizes = [16, 144], strides = [1, 1]} : vector<48x144xf32> to vector<16x144xf32>
    %53 = vector.extract_strided_slice %48 {offsets = [0, 0], sizes = [16, 144], strides = [1, 1]} : vector<48x144xf32> to vector<16x144xf32>
    %54 = tpu.concatenate %52, %53 in 0 : vector<16x144xf32>, vector<16x144xf32> -> vector<32x144xf32>
    %c0_20 = arith.constant 0 : index
    %c0_21 = arith.constant 0 : index
    %55 = vector.load %arg5[%c0_20, %c0_21] : memref<432x128xf32, #tpu.memory_space<vmem>>, vector<144x128xf32>
    %cst_22 = arith.constant dense<0.000000e+00> : vector<32x128xf32>
    %56 = tpu.matmul %54, %55, %cst_22 {dimension_numbers = #tpu.dot_dimension_numbers<[1], [0], [0], [1], [0, 0, 1, 1], [], []>} : vector<32x144xf32>, vector<144x128xf32>, vector<32x128xf32> -> vector<32x128xf32>
    %57 = arith.addf %51, %56 : vector<32x128xf32>
    %58 = vector.extract_strided_slice %46 {offsets = [16, 0], sizes = [16, 144], strides = [1, 1]} : vector<48x144xf32> to vector<16x144xf32>
    %59 = vector.extract_strided_slice %48 {offsets = [16, 0], sizes = [16, 144], strides = [1, 1]} : vector<48x144xf32> to vector<16x144xf32>
    %60 = tpu.concatenate %58, %59 in 0 : vector<16x144xf32>, vector<16x144xf32> -> vector<32x144xf32>
    %c144_23 = arith.constant 144 : index
    %c0_24 = arith.constant 0 : index
    %61 = vector.load %arg5[%c144_23, %c0_24] : memref<432x128xf32, #tpu.memory_space<vmem>>, vector<144x128xf32>
    %cst_25 = arith.constant dense<0.000000e+00> : vector<32x128xf32>
    %62 = tpu.matmul %60, %61, %cst_25 {dimension_numbers = #tpu.dot_dimension_numbers<[1], [0], [0], [1], [0, 0, 1, 1], [], []>} : vector<32x144xf32>, vector<144x128xf32>, vector<32x128xf32> -> vector<32x128xf32>
    %63 = arith.addf %57, %62 : vector<32x128xf32>
    %64 = vector.extract_strided_slice %46 {offsets = [32, 0], sizes = [16, 144], strides = [1, 1]} : vector<48x144xf32> to vector<16x144xf32>
    %65 = vector.extract_strided_slice %48 {offsets = [32, 0], sizes = [16, 144], strides = [1, 1]} : vector<48x144xf32> to vector<16x144xf32>
    %66 = tpu.concatenate %64, %65 in 0 : vector<16x144xf32>, vector<16x144xf32> -> vector<32x144xf32>
    %c288_26 = arith.constant 288 : index
    %c0_27 = arith.constant 0 : index
    %67 = vector.load %arg5[%c288_26, %c0_27] : memref<432x128xf32, #tpu.memory_space<vmem>>, vector<144x128xf32>
    %cst_28 = arith.constant dense<0.000000e+00> : vector<32x128xf32>
    %68 = tpu.matmul %66, %67, %cst_28 {dimension_numbers = #tpu.dot_dimension_numbers<[1], [0], [0], [1], [0, 0, 1, 1], [], []>} : vector<32x144xf32>, vector<144x128xf32>, vector<32x128xf32> -> vector<32x128xf32>
    %69 = arith.addf %63, %68 : vector<32x128xf32>
    %70 = math.tanh %69 : vector<32x128xf32>
    %71 = vector.extract_strided_slice %1 {offsets = [0, 0], sizes = [32, 128], strides = [1, 1]} : vector<32x144xf32> to vector<32x128xf32>
    %72 = arith.mulf %32, %70 : vector<32x128xf32>
    %cst_29 = arith.constant 1.000000e+00 : f32
    %73 = vector.broadcast %cst_29 : f32 to vector<32x128xf32>
    %74 = arith.subf %73, %32 : vector<32x128xf32>
    %75 = arith.mulf %74, %71 : vector<32x128xf32>
    %76 = arith.addf %72, %75 : vector<32x128xf32>
    %c0_30 = arith.constant 0 : index
    %c0_31 = arith.constant 0 : index
    %77 = vector.load %arg7[%c0_30, %c0_31] : memref<32x128xf32, #tpu.memory_space<vmem>>, vector<32x128xf32>
    tpu.vector_store %arg7[%c0_30, %c0_31], %76 {strides = array<i32>} : memref<32x128xf32, #tpu.memory_space<vmem>>, vector<32x128xf32>,
    return
  }
  func.func @transform_0(%arg0: i32) -> (i32, i32) {
    %c0_i32 = arith.constant 0 : i32
    %c0_i32_0 = arith.constant 0 : i32
    %c0_i32_1 = arith.constant 0 : i32
    return %c0_i32, %c0_i32_0 : i32, i32
  }
  func.func @transform_1(%arg0: i32) -> (i32, i32) {
    %c0_i32 = arith.constant 0 : i32
    %c0_i32_0 = arith.constant 0 : i32
    return %arg0, %c0_i32 : i32, i32
  }
  func.func @transform_2(%arg0: i32) -> (i32, i32) {
    %c0_i32 = arith.constant 0 : i32
    %c0_i32_0 = arith.constant 0 : i32
    %c0_i32_1 = arith.constant 0 : i32
    return %c0_i32, %c0_i32_0 : i32, i32
  }
  func.func @transform_3(%arg0: i32) -> (i32, i32) {
    %c0_i32 = arith.constant 0 : i32
    %c0_i32_0 = arith.constant 0 : i32
    %c0_i32_1 = arith.constant 0 : i32
    return %c0_i32, %c0_i32_0 : i32, i32
  }
  func.func @transform_4(%arg0: i32) -> (i32, i32) {
    %c0_i32 = arith.constant 0 : i32
    %c0_i32_0 = arith.constant 0 : i32
    %c0_i32_1 = arith.constant 0 : i32
    return %c0_i32, %c0_i32_0 : i32, i32
  }
  func.func @transform_5(%arg0: i32) -> (i32, i32) {
    %c0_i32 = arith.constant 0 : i32
    %c0_i32_0 = arith.constant 0 : i32
    %c0_i32_1 = arith.constant 0 : i32
    return %c0_i32, %c0_i32_0 : i32, i32
  }
  func.func @transform_6(%arg0: i32) -> (i32, i32) {
    %c0_i32 = arith.constant 0 : i32
    %c0_i32_0 = arith.constant 0 : i32
    return %arg0, %c0_i32 : i32, i32
  }
}

</mosaic_0001>

<llo_original>
// kernel: tpu_custom_call.1
$region0: #{tpu_custom_call.1}
  #allocation0 [shape = 'u32[]', space=smem, size = 0x4, offset = 0x4, fixed_abs, tag = 'smem constant byte address 0x4 - core index']
  #allocation1 [shape = 'u32[144,128]{1,0:T(1,128)}', space=vmem, size = 0x12000, scoped, tag = 'internal scratch']
  %s0 = inlined_call_operand.vmem [shape: f32[48,16], index: 0, kind: input, shape index: {}]
  %s1 = inlined_call_operand.vmem [shape: f32[32,144], index: 1, kind: input, shape index: {}]
  %s2 = inlined_call_operand.vmem [shape: f32[432,272], index: 2, kind: input, shape index: {}]
  %s3 = inlined_call_operand.vmem [shape: f32[1,272], index: 3, kind: input, shape index: {}]
  %s4 = inlined_call_operand.vmem [shape: f32[432,128], index: 4, kind: input, shape index: {}]
  %s5 = inlined_call_operand.vmem [shape: f32[1,128], index: 5, kind: input, shape index: {}]
  %s6 = inlined_call_operand.hbm [shape: f32[32,128], index: 6, kind: output, shape index: {}]
  %s7 = sld [smem:[#allocation0]]
  $region34: #{tpu_custom_call.1} parent=0
    _
  %s9 = ssub.s32 1, %s7
  %s10 = scalar_select 0, %s9, %s7
  $region1: #{tpu_custom_call.1} parent=0
    #allocation2 [shape = 'u8[16384]{0}', space=vmem, size = 0x4000, scoped, tag = 'output window, operand 0, single buffered']
    #allocation3 [shape = 's32[1]{0}', space=sflag, size = 0x4, scoped, tag = 'scoped memory for tpu_custom_call.1']
    %11 = vsyncpa [#allocation3], 0
    // Predicated region
    $region2: #{tpu_custom_call.1} parent=1 // pred_check
      _
    $region3: #{tpu_custom_call.1} parent=1 // pred_check_branch
      %13 = sbr.rel (0) target = $region5
    $region4: #{tpu_custom_call.1} parent=1 // pred_region
      _
    $region5: #{tpu_custom_call.1} parent=1 // pred_fallthru
      _
    // Predicated region
    $region6: #{tpu_custom_call.1} parent=1 // pred_check
      _
    $region7: #{tpu_custom_call.1} parent=1 // pred_check_branch
      %15 = sbr.rel (0) target = $region9
    $region8: #{tpu_custom_call.1} parent=1 // pred_region
      _
    $region9: #{tpu_custom_call.1} parent=1 // pred_fallthru
      _
    // Predicated region
    $region10: #{tpu_custom_call.1} parent=1 // pred_check
      _
    $region11: #{tpu_custom_call.1} parent=1 // pred_check_branch
      %17 = sbr.rel (0) target = $region13
    $region12: #{tpu_custom_call.1} parent=1 // pred_region
      _
    $region13: #{tpu_custom_call.1} parent=1 // pred_fallthru
      _
    // Predicated region
    $region14: #{tpu_custom_call.1} parent=1 // pred_check
      _
    $region15: #{tpu_custom_call.1} parent=1 // pred_check_branch
      %19 = sbr.rel (0) target = $region17
    $region16: #{tpu_custom_call.1} parent=1 // pred_region
      _
    $region17: #{tpu_custom_call.1} parent=1 // pred_fallthru
      _
    // Predicated region
    $region18: #{tpu_custom_call.1} parent=1 // pred_check
      _
    $region19: #{tpu_custom_call.1} parent=1 // pred_check_branch
      %21 = sbr.rel (0) target = $region21
    $region20: #{tpu_custom_call.1} parent=1 // pred_region
      _
    $region21: #{tpu_custom_call.1} parent=1 // pred_fallthru
      _
    // Predicated region
    $region22: #{tpu_custom_call.1} parent=1 // pred_check
      _
    $region23: #{tpu_custom_call.1} parent=1 // pred_check_branch
      %23 = sbr.rel (0) target = $region25
    $region24: #{tpu_custom_call.1} parent=1 // pred_region
      _
    $region25: #{tpu_custom_call.1} parent=1 // pred_fallthru
      _
    %v24 = vld [vmem:[%s0] sm:$0xff]
    %v25 = vld [vmem:[%s0 + $0x8] sm:$0xff]
    %v26 = vld [vmem:[%s0 + $0x10] sm:$0xff]
    %v27 = vld [vmem:[%s0 + $0x18] sm:$0xff]
    %v28 = vld [vmem:[%s0 + $0x20] sm:$0xff]
    %v29 = vld [vmem:[%s0 + $0x28] sm:$0xff]
    %v30 = vld [vmem:[%s1] sm:$0xff]
    %v31 = vld [vmem:[%s1 + $0x8] sm:$0xff]
    %v32 = vld [vmem:[%s1 + $0x10] sm:$0xff]
    %v33 = vld [vmem:[%s1 + $0x18] sm:$0xff]
    %v34 = vld [vmem:[%s1 + $0x20] sm:$0xff]
    %v35 = vld [vmem:[%s1 + $0x28] sm:$0xff]
    %v36 = vld [vmem:[%s1 + $0x30] sm:$0xff]
    %v37 = vld [vmem:[%s1 + $0x38] sm:$0xff]
    %vm38 = vcmask 130048
    %v40 = vsel %vm38, %v24, 0
    %v43 = vsel %vm38, %v25, 0
    %v46 = vsel %vm38, %v26, 0
    %v49 = vsel %vm38, %v27, 0
    %v52 = vsel %vm38, %v28, 0
    %v55 = vsel %vm38, %v29, 0
    %57 = vmatprep.subr.mxu0 0.0
    %58 = vmatpush1.msra.mxu0 0.0
    %59 = vmatprep.subr.mxu0 0.0
    %60 = vmatpush1.msra.mxu0 0.0
    %61 = vmatprep.subr.mxu0 0.0
    %62 = vmatpush1.msra.mxu0 0.0
    %63 = vmatprep.subr.mxu0 0.0
    %64 = vmatpush1.msra.mxu0 0.0
    %65 = vmatprep.subr.mxu0 0.0
    %66 = vmatpush1.msra.mxu0 0.0
    %67 = vmatprep.subr.mxu0 0.0
    %68 = vmatpush1.msra.mxu0 0.0
    %69 = vmatprep.subr.mxu0 0.0
    %70 = vmatpush1.msra.mxu0 0.0
    %71 = vmatprep.subr.mxu0 0.0
    %72 = vmatpush1.msra.mxu0 0.0
    %73 = vmatprep.subr.mxu0 0.0
    %74 = vmatpush1.msra.mxu0 0.0
    %75 = vmatprep.subr.mxu0 0.0
    %76 = vmatpush1.msra.mxu0 0.0
    %77 = vmatprep.subr.mxu0 0.0
    %78 = vmatpush1.msra.mxu0 0.0
    %79 = vmatprep.subr.mxu0 0.0
    %80 = vmatpush1.msra.mxu0 0.0
    %81 = vmatprep.subr.mxu0 0.0
    %82 = vmatpush1.msra.mxu0 0.0
    %83 = vmatprep.subr.mxu0 0.0
    %84 = vmatpush1.msra.mxu0 0.0
    %85 = vmatprep.subr.mxu0 %v33
    %86 = vmatpush1.msra.mxu0 %v32
    %87 = vmatprep.subr.mxu0 %v31
    %88 = vmatpush1.msra.mxu0 %v30
    %89 = vmatprep.subr.mxu0 0.0
    %90 = vmatpush2.msra.mxu0 0.0
    %91 = vmatprep.subr.mxu0 0.0
    %92 = vmatpush2.msra.mxu0 0.0
    %93 = vmatprep.subr.mxu0 0.0
    %94 = vmatpush2.msra.mxu0 0.0
    %95 = vmatprep.subr.mxu0 0.0
    %96 = vmatpush2.msra.mxu0 0.0
    %97 = vmatprep.subr.mxu0 0.0
    %98 = vmatpush2.msra.mxu0 0.0
    %99 = vmatprep.subr.mxu0 0.0
    %100 = vmatpush2.msra.mxu0 0.0
    %101 = vmatprep.subr.mxu0 0.0
    %102 = vmatpush2.msra.mxu0 0.0
    %103 = vmatprep.subr.mxu0 0.0
    %104 = vmatpush2.msra.mxu0 0.0
    %105 = vmatprep.subr.mxu0 0.0
    %106 = vmatpush2.msra.mxu0 0.0
    %107 = vmatprep.subr.mxu0 0.0
    %108 = vmatpush2.msra.mxu0 0.0
    %109 = vmatprep.subr.mxu0 0.0
    %110 = vmatpush2.msra.mxu0 0.0
    %111 = vmatprep.subr.mxu0 0.0
    %112 = vmatpush2.msra.mxu0 0.0
    %113 = vmatprep.subr.mxu0 0.0
    %114 = vmatpush2.msra.mxu0 0.0
    %115 = vmatprep.subr.mxu0 0.0
    %116 = vmatpush2.msra.mxu0 0.0
    %117 = vmatprep.subr.mxu0 0.0
    %118 = vmatpush2.msra.mxu0 0.0
    %119 = vmatprep.subr.mxu0 0.0
    %120 = vmatpush2.msra.mxu0 0.0
    %121 = vmatprep.mubr.f32.mxu0 0.0
    %122 = vmatmul.mubr.f32.gmra.mxu0 %v40
    %v123 = vpop.f32.mrf.mxu0
    %v124 = vadd.f32 0.0, %v123
    %v125 = vpop.f32.mrf.mxu0
    %v126 = vadd.f32 0.0, %v125
    %127 = vmatprep.mubr.f32.mxu0 0.0
    %128 = vmatmul.mubr.f32.gmra.mxu0 %v43
    %v129 = vpop.f32.mrf.mxu0
    %v130 = vadd.f32 0.0, %v129
    %v131 = vpop.f32.mrf.mxu0
    %v132 = vadd.f32 0.0, %v131
    %133 = vmatprep.mubr.f32.mxu0 0.0
    %134 = vmatmul.mubr.f32.gmra.mxu0 %v46
    %v135 = vpop.f32.mrf.mxu0
    %v136 = vadd.f32 0.0, %v135
    %v137 = vpop.f32.mrf.mxu0
    %v138 = vadd.f32 0.0, %v137
    %139 = vmatprep.mubr.f32.mxu0 0.0
    %140 = vmatmul.mubr.f32.gmra.mxu0 %v49
    %v141 = vpop.f32.mrf.mxu0
    %v142 = vadd.f32 0.0, %v141
    %v143 = vpop.f32.mrf.mxu0
    %v144 = vadd.f32 0.0, %v143
    %145 = vmatprep.mubr.f32.mxu0 0.0
    %146 = vmatmul.mubr.f32.gmra.mxu0 %v52
    %v147 = vpop.f32.mrf.mxu0
    %v148 = vadd.f32 0.0, %v147
    %v149 = vpop.f32.mrf.mxu0
    %v150 = vadd.f32 0.0, %v149
    %151 = vmatprep.mubr.f32.mxu0 0.0
    %152 = vmatmul.mubr.f32.gmra.mxu0 %v55
    %v153 = vpop.f32.mrf.mxu0
    %v154 = vadd.f32 0.0, %v153
    %v155 = vpop.f32.mrf.mxu0
    %v156 = vadd.f32 0.0, %v155
    %157 = vdwg.mxu0
    %158 = vmatprep.subr.mxu0 0.0
    %159 = vmatpush1.msra.mxu0 0.0
    %160 = vmatprep.subr.mxu0 0.0
    %161 = vmatpush1.msra.mxu0 0.0
    %162 = vmatprep.subr.mxu0 0.0
    %163 = vmatpush1.msra.mxu0 0.0
    %164 = vmatprep.subr.mxu0 0.0
    %165 = vmatpush1.msra.mxu0 0.0
    %166 = vmatprep.subr.mxu0 0.0
    %167 = vmatpush1.msra.mxu0 0.0
    %168 = vmatprep.subr.mxu0 0.0
    %169 = vmatpush1.msra.mxu0 0.0
    %170 = vmatprep.subr.mxu0 0.0
    %171 = vmatpush1.msra.mxu0 0.0
    %172 = vmatprep.subr.mxu0 0.0
    %173 = vmatpush1.msra.mxu0 0.0
    %174 = vmatprep.subr.mxu0 0.0
    %175 = vmatpush1.msra.mxu0 0.0
    %176 = vmatprep.subr.mxu0 0.0
    %177 = vmatpush1.msra.mxu0 0.0
    %178 = vmatprep.subr.mxu0 0.0
    %179 = vmatpush1.msra.mxu0 0.0
    %180 = vmatprep.subr.mxu0 0.0
    %181 = vmatpush1.msra.mxu0 0.0
    %182 = vmatprep.subr.mxu0 0.0
    %183 = vmatpush1.msra.mxu0 0.0
    %184 = vmatprep.subr.mxu0 0.0
    %185 = vmatpush1.msra.mxu0 0.0
    %186 = vmatprep.subr.mxu0 %v37
    %187 = vmatpush1.msra.mxu0 %v36
    %188 = vmatprep.subr.mxu0 %v35
    %189 = vmatpush1.msra.mxu0 %v34
    %190 = vmatprep.subr.mxu0 0.0
    %191 = vmatpush2.msra.mxu0 0.0
    %192 = vmatprep.subr.mxu0 0.0
    %193 = vmatpush2.msra.mxu0 0.0
    %194 = vmatprep.subr.mxu0 0.0
    %195 = vmatpush2.msra.mxu0 0.0
    %196 = vmatprep.subr.mxu0 0.0
    %197 = vmatpush2.msra.mxu0 0.0
    %198 = vmatprep.subr.mxu0 0.0
    %199 = vmatpush2.msra.mxu0 0.0
    %200 = vmatprep.subr.mxu0 0.0
    %201 = vmatpush2.msra.mxu0 0.0
    %202 = vmatprep.subr.mxu0 0.0
    %203 = vmatpush2.msra.mxu0 0.0
    %204 = vmatprep.subr.mxu0 0.0
    %205 = vmatpush2.msra.mxu0 0.0
    %206 = vmatprep.subr.mxu0 0.0
    %207 = vmatpush2.msra.mxu0 0.0
    %208 = vmatprep.subr.mxu0 0.0
    %209 = vmatpush2.msra.mxu0 0.0
    %210 = vmatprep.subr.mxu0 0.0
    %211 = vmatpush2.msra.mxu0 0.0
    %212 = vmatprep.subr.mxu0 0.0
    %213 = vmatpush2.msra.mxu0 0.0
    %214 = vmatprep.subr.mxu0 0.0
    %215 = vmatpush2.msra.mxu0 0.0
    %216 = vmatprep.subr.mxu0 0.0
    %217 = vmatpush2.msra.mxu0 0.0
    %218 = vmatprep.subr.mxu0 0.0
    %219 = vmatpush2.msra.mxu0 0.0
    %220 = vmatprep.subr.mxu0 0.0
    %221 = vmatpush2.msra.mxu0 0.0
    %222 = vmatprep.mubr.f32.mxu0 0.0
    %223 = vmatmul.mubr.f32.gmra.mxu0 %v40
    %v224 = vpop.f32.mrf.mxu0
    %v225 = vadd.f32 0.0, %v224
    %v226 = vpop.f32.mrf.mxu0
    %v227 = vadd.f32 0.0, %v226
    %228 = vmatprep.mubr.f32.mxu0 0.0
    %229 = vmatmul.mubr.f32.gmra.mxu0 %v43
    %v230 = vpop.f32.mrf.mxu0
    %v231 = vadd.f32 0.0, %v230
    %v232 = vpop.f32.mrf.mxu0
    %v233 = vadd.f32 0.0, %v232
    %234 = vmatprep.mubr.f32.mxu0 0.0
    %235 = vmatmul.mubr.f32.gmra.mxu0 %v46
    %v236 = vpop.f32.mrf.mxu0
    %v237 = vadd.f32 0.0, %v236
    %v238 = vpop.f32.mrf.mxu0
    %v239 = vadd.f32 0.0, %v238
    %240 = vmatprep.mubr.f32.mxu0 0.0
    %241 = vmatmul.mubr.f32.gmra.mxu0 %v49
    %v242 = vpop.f32.mrf.mxu0
    %v243 = vadd.f32 0.0, %v242
    %v244 = vpop.f32.mrf.mxu0
    %v245 = vadd.f32 0.0, %v244
    %246 = vmatprep.mubr.f32.mxu0 0.0
    %247 = vmatmul.mubr.f32.gmra.mxu0 %v52
    %v248 = vpop.f32.mrf.mxu0
    %v249 = vadd.f32 0.0, %v248
    %v250 = vpop.f32.mrf.mxu0
    %v251 = vadd.f32 0.0, %v250
    %252 = vmatprep.mubr.f32.mxu0 0.0
    %253 = vmatmul.mubr.f32.gmra.mxu0 %v55
    %v254 = vpop.f32.mrf.mxu0
    %v255 = vadd.f32 0.0, %v254
    %v256 = vpop.f32.mrf.mxu0
    %v257 = vadd.f32 0.0, %v256
    %258 = vdwg.mxu0
    %v259 = vld [vmem:[%s3] sm:$0x7]
    %v261 = vlaneseq
    %v262 = vshrl.u32 %v261, 7
    %v263 = vsub.s32 0, %v262
    %v264 = vrot.slane %v259, %v263
    %v265 = vlaneseq
    %v266 = vshrl.u32 %v265, 7
    %v267 = vsub.s32 1, %v266
    %v268 = vrot.slane %v259, %v267
    %v269 = vlaneseq
    %v270 = vshrl.u32 %v269, 7
    %v271 = vsub.s32 2, %v270
    %v272 = vrot.slane %v259, %v271
    %v276 = vld [vmem:[%s2] sm:$0xff]
    %v277 = vld [vmem:[%s2 + $0x8] sm:$0xff]
    %v278 = vld [vmem:[%s2 + $0x10] sm:$0xff]
    %v279 = vld [vmem:[%s2 + $0x18] sm:$0xff]
    %v280 = vld [vmem:[%s2 + $0x20] sm:$0xff]
    %v281 = vld [vmem:[%s2 + $0x28] sm:$0xff]
    %v282 = vld [vmem:[%s2 + $0x30] sm:$0xff]
    %v283 = vld [vmem:[%s2 + $0x38] sm:$0xff]
    %v284 = vld [vmem:[%s2 + $0x40] sm:$0xff]
    %v285 = vld [vmem:[%s2 + $0x48] sm:$0xff]
    %v286 = vld [vmem:[%s2 + $0x50] sm:$0xff]
    %v287 = vld [vmem:[%s2 + $0x58] sm:$0xff]
    %v288 = vld [vmem:[%s2 + $0x60] sm:$0xff]
    %v289 = vld [vmem:[%s2 + $0x68] sm:$0xff]
    %v290 = vld [vmem:[%s2 + $0x70] sm:$0xff]
    %v291 = vld [vmem:[%s2 + $0x78] sm:$0xff]
    %v292 = vld [vmem:[%s2 + $0x80] sm:$0xff]
    %v293 = vld [vmem:[%s2 + $0x88] sm:$0xff]
    %v294 = vld [vmem:[%s2 + $0x90] sm:$0xff]
    %v295 = vld [vmem:[%s2 + $0x98] sm:$0xff]
    %v296 = vld [vmem:[%s2 + $0xa0] sm:$0xff]
    %v297 = vld [vmem:[%s2 + $0xa8] sm:$0xff]
    %v298 = vld [vmem:[%s2 + $0xb0] sm:$0xff]
    %v299 = vld [vmem:[%s2 + $0xb8] sm:$0xff]
    %v300 = vld [vmem:[%s2 + $0xc0] sm:$0xff]
    %v301 = vld [vmem:[%s2 + $0xc8] sm:$0xff]
    %v302 = vld [vmem:[%s2 + $0xd0] sm:$0xff]
    %v303 = vld [vmem:[%s2 + $0xd8] sm:$0xff]
    %v304 = vld [vmem:[%s2 + $0xe0] sm:$0xff]
    %v305 = vld [vmem:[%s2 + $0xe8] sm:$0xff]
    %v306 = vld [vmem:[%s2 + $0xf0] sm:$0xff]
    %v307 = vld [vmem:[%s2 + $0xf8] sm:$0xff]
    %v308 = vld [vmem:[%s2 + $0x100] sm:$0xff]
    %v309 = vld [vmem:[%s2 + $0x108] sm:$0xff]
    %v310 = vld [vmem:[%s2 + $0x110] sm:$0xff]
    %v311 = vld [vmem:[%s2 + $0x118] sm:$0xff]
    %v312 = vld [vmem:[%s2 + $0x120] sm:$0xff]
    %v313 = vld [vmem:[%s2 + $0x128] sm:$0xff]
    %v314 = vld [vmem:[%s2 + $0x130] sm:$0xff]
    %v315 = vld [vmem:[%s2 + $0x138] sm:$0xff]
    %v316 = vld [vmem:[%s2 + $0x140] sm:$0xff]
    %v317 = vld [vmem:[%s2 + $0x148] sm:$0xff]
    %v318 = vld [vmem:[%s2 + $0x150] sm:$0xff]
    %v319 = vld [vmem:[%s2 + $0x158] sm:$0xff]
    %v320 = vld [vmem:[%s2 + $0x160] sm:$0xff]
    %v321 = vld [vmem:[%s2 + $0x168] sm:$0xff]
    %v322 = vld [vmem:[%s2 + $0x170] sm:$0xff]
    %v323 = vld [vmem:[%s2 + $0x178] sm:$0xff]
    %v324 = vld [vmem:[%s2 + $0x180] sm:$0xff]
    %v325 = vld [vmem:[%s2 + $0x188] sm:$0xff]
    %v326 = vld [vmem:[%s2 + $0x190] sm:$0xff]
    %v327 = vld [vmem:[%s2 + $0x198] sm:$0xff]
    %v328 = vld [vmem:[%s2 + $0x1a0] sm:$0xff]
    %v329 = vld [vmem:[%s2 + $0x1a8] sm:$0xff]
    %v331 = vsel %vm38, %v126, 0
    %v334 = vsel %vm38, %v132, 0
    %v337 = vsel %vm38, %v227, 0
    %v340 = vsel %vm38, %v233, 0
    %342 = vmatprep.subr.mxu0 %v322
    %343 = vmatpush1.msra.mxu0 %v321
    %344 = vmatprep.subr.mxu0 %v319
    %345 = vmatpush1.msra.mxu0 %v318
    %346 = vmatprep.subr.mxu0 %v316
    %347 = vmatpush1.msra.mxu0 %v315
    %348 = vmatprep.subr.mxu0 %v313
    %349 = vmatpush1.msra.mxu0 %v312
    %350 = vmatprep.subr.mxu0 %v310
    %351 = vmatpush1.msra.mxu0 %v309
    %352 = vmatprep.subr.mxu0 %v307
    %353 = vmatpush1.msra.mxu0 %v306
    %354 = vmatprep.subr.mxu0 %v304
    %355 = vmatpush1.msra.mxu0 %v303
    %356 = vmatprep.subr.mxu0 %v301
    %357 = vmatpush1.msra.mxu0 %v300
    %358 = vmatprep.subr.mxu0 %v298
    %359 = vmatpush1.msra.mxu0 %v297
    %360 = vmatprep.subr.mxu0 %v295
    %361 = vmatpush1.msra.mxu0 %v294
    %362 = vmatprep.subr.mxu0 %v292
    %363 = vmatpush1.msra.mxu0 %v291
    %364 = vmatprep.subr.mxu0 %v289
    %365 = vmatpush1.msra.mxu0 %v288
    %366 = vmatprep.subr.mxu0 %v286
    %367 = vmatpush1.msra.mxu0 %v285
    %368 = vmatprep.subr.mxu0 %v283
    %369 = vmatpush1.msra.mxu0 %v282
    %370 = vmatprep.subr.mxu0 %v280
    %371 = vmatpush1.msra.mxu0 %v279
    %372 = vmatprep.subr.mxu0 %v277
    %373 = vmatpush1.msra.mxu0 %v276
    %374 = vmatprep.subr.mxu0 0.0
    %375 = vmatpush2.msra.mxu0 0.0
    %376 = vmatprep.subr.mxu0 0.0
    %377 = vmatpush2.msra.mxu0 0.0
    %378 = vmatprep.subr.mxu0 0.0
    %379 = vmatpush2.msra.mxu0 0.0
    %380 = vmatprep.subr.mxu0 0.0
    %381 = vmatpush2.msra.mxu0 0.0
    %382 = vmatprep.subr.mxu0 0.0
    %383 = vmatpush2.msra.mxu0 0.0
    %384 = vmatprep.subr.mxu0 0.0
    %385 = vmatpush2.msra.mxu0 0.0
    %386 = vmatprep.subr.mxu0 0.0
    %387 = vmatpush2.msra.mxu0 0.0
    %388 = vmatprep.subr.mxu0 0.0
    %389 = vmatpush2.msra.mxu0 0.0
    %390 = vmatprep.subr.mxu0 0.0
    %391 = vmatpush2.msra.mxu0 0.0
    %392 = vmatprep.subr.mxu0 0.0
    %393 = vmatpush2.msra.mxu0 0.0
    %394 = vmatprep.subr.mxu0 0.0
    %395 = vmatpush2.msra.mxu0 0.0
    %396 = vmatprep.subr.mxu0 0.0
    %397 = vmatpush2.msra.mxu0 0.0
    %398 = vmatprep.subr.mxu0 0.0
    %399 = vmatpush2.msra.mxu0 0.0
    %400 = vmatprep.subr.mxu0 0.0
    %401 = vmatpush2.msra.mxu0 0.0
    %402 = vmatprep.subr.mxu0 %v328
    %403 = vmatpush2.msra.mxu0 %v327
    %404 = vmatprep.subr.mxu0 %v325
    %405 = vmatpush2.msra.mxu0 %v324
    %406 = vmatprep.mubr.f32.mxu0 %v331
    %407 = vmatmul.mubr.f32.gmra.mxu0 %v124
    %v408 = vpop.f32.mrf.mxu0
    %v409 = vadd.f32 0.0, %v408
    %v410 = vpop.f32.mrf.mxu0
    %v411 = vadd.f32 0.0, %v410
    %412 = vmatprep.mubr.f32.mxu0 %v334
    %413 = vmatmul.mubr.f32.gmra.mxu0 %v130
    %v414 = vpop.f32.mrf.mxu0
    %v415 = vadd.f32 0.0, %v414
    %v416 = vpop.f32.mrf.mxu0
    %v417 = vadd.f32 0.0, %v416
    %418 = vmatprep.mubr.f32.mxu0 %v337
    %419 = vmatmul.mubr.f32.gmra.mxu0 %v225
    %v420 = vpop.f32.mrf.mxu0
    %v421 = vadd.f32 0.0, %v420
    %v422 = vpop.f32.mrf.mxu0
    %v423 = vadd.f32 0.0, %v422
    %424 = vmatprep.mubr.f32.mxu0 %v340
    %425 = vmatmul.mubr.f32.gmra.mxu0 %v231
    %v426 = vpop.f32.mrf.mxu0
    %v427 = vadd.f32 0.0, %v426
    %v428 = vpop.f32.mrf.mxu0
    %v429 = vadd.f32 0.0, %v428
    %430 = vdwg.mxu0
    %431 = vmatprep.subr.mxu0 0.0
    %432 = vmatpush1.msra.mxu0 %v323
    %433 = vmatprep.subr.mxu0 0.0
    %434 = vmatpush1.msra.mxu0 %v320
    %435 = vmatprep.subr.mxu0 0.0
    %436 = vmatpush1.msra.mxu0 %v317
    %437 = vmatprep.subr.mxu0 0.0
    %438 = vmatpush1.msra.mxu0 %v314
    %439 = vmatprep.subr.mxu0 0.0
    %440 = vmatpush1.msra.mxu0 %v311
    %441 = vmatprep.subr.mxu0 0.0
    %442 = vmatpush1.msra.mxu0 %v308
    %443 = vmatprep.subr.mxu0 0.0
    %444 = vmatpush1.msra.mxu0 %v305
    %445 = vmatprep.subr.mxu0 0.0
    %446 = vmatpush1.msra.mxu0 %v302
    %447 = vmatprep.subr.mxu0 0.0
    %448 = vmatpush1.msra.mxu0 %v299
    %449 = vmatprep.subr.mxu0 0.0
    %450 = vmatpush1.msra.mxu0 %v296
    %451 = vmatprep.subr.mxu0 0.0
    %452 = vmatpush1.msra.mxu0 %v293
    %453 = vmatprep.subr.mxu0 0.0
    %454 = vmatpush1.msra.mxu0 %v290
    %455 = vmatprep.subr.mxu0 0.0
    %456 = vmatpush1.msra.mxu0 %v287
    %457 = vmatprep.subr.mxu0 0.0
    %458 = vmatpush1.msra.mxu0 %v284
    %459 = vmatprep.subr.mxu0 0.0
    %460 = vmatpush1.msra.mxu0 %v281
    %461 = vmatprep.subr.mxu0 0.0
    %462 = vmatpush1.msra.mxu0 %v278
    %463 = vmatprep.subr.mxu0 0.0
    %464 = vmatpush2.msra.mxu0 0.0
    %465 = vmatprep.subr.mxu0 0.0
    %466 = vmatpush2.msra.mxu0 0.0
    %467 = vmatprep.subr.mxu0 0.0
    %468 = vmatpush2.msra.mxu0 0.0
    %469 = vmatprep.subr.mxu0 0.0
    %470 = vmatpush2.msra.mxu0 0.0
    %471 = vmatprep.subr.mxu0 0.0
    %472 = vmatpush2.msra.mxu0 0.0
    %473 = vmatprep.subr.mxu0 0.0
    %474 = vmatpush2.msra.mxu0 0.0
    %475 = vmatprep.subr.mxu0 0.0
    %476 = vmatpush2.msra.mxu0 0.0
    %477 = vmatprep.subr.mxu0 0.0
    %478 = vmatpush2.msra.mxu0 0.0
    %479 = vmatprep.subr.mxu0 0.0
    %480 = vmatpush2.msra.mxu0 0.0
    %481 = vmatprep.subr.mxu0 0.0
    %482 = vmatpush2.msra.mxu0 0.0
    %483 = vmatprep.subr.mxu0 0.0
    %484 = vmatpush2.msra.mxu0 0.0
    %485 = vmatprep.subr.mxu0 0.0
    %486 = vmatpush2.msra.mxu0 0.0
    %487 = vmatprep.subr.mxu0 0.0
    %488 = vmatpush2.msra.mxu0 0.0
    %489 = vmatprep.subr.mxu0 0.0
    %490 = vmatpush2.msra.mxu0 0.0
    %491 = vmatprep.subr.mxu0 0.0
    %492 = vmatpush2.msra.mxu0 %v329
    %493 = vmatprep.subr.mxu0 0.0
    %494 = vmatpush2.msra.mxu0 %v326
    %495 = vmatprep.mubr.f32.mxu0 %v331
    %496 = vmatmul.mubr.f32.gmra.mxu0 %v124
    %v497 = vpop.f32.mrf.mxu0
    %v498 = vadd.f32 0.0, %v497
    %v499 = vpop.f32.mrf.mxu0
    %500 = vmatprep.mubr.f32.mxu0 %v334
    %501 = vmatmul.mubr.f32.gmra.mxu0 %v130
    %v502 = vpop.f32.mrf.mxu0
    %v503 = vadd.f32 0.0, %v502
    %v504 = vpop.f32.mrf.mxu0
    %505 = vmatprep.mubr.f32.mxu0 %v337
    %506 = vmatmul.mubr.f32.gmra.mxu0 %v225
    %v507 = vpop.f32.mrf.mxu0
    %v508 = vadd.f32 0.0, %v507
    %v509 = vpop.f32.mrf.mxu0
    %510 = vmatprep.mubr.f32.mxu0 %v340
    %511 = vmatmul.mubr.f32.gmra.mxu0 %v231
    %v512 = vpop.f32.mrf.mxu0
    %v513 = vadd.f32 0.0, %v512
    %v514 = vpop.f32.mrf.mxu0
    %515 = vdwg.mxu0
    %v516 = vadd.f32 %v264, %v409
    %v517 = vadd.f32 %v268, %v411
    %v518 = vadd.f32 %v272, %v498
    %v519 = vadd.f32 %v264, %v415
    %v520 = vadd.f32 %v268, %v417
    %v521 = vadd.f32 %v272, %v503
    %v522 = vadd.f32 %v264, %v421
    %v523 = vadd.f32 %v268, %v423
    %v524 = vadd.f32 %v272, %v508
    %v525 = vadd.f32 %v264, %v427
    %v526 = vadd.f32 %v268, %v429
    %v527 = vadd.f32 %v272, %v513
    %v528 = vld [vmem:[%s2 + $0x1b0] sm:$0xff]
    %v529 = vld [vmem:[%s2 + $0x1b8] sm:$0xff]
    %v530 = vld [vmem:[%s2 + $0x1c0] sm:$0xff]
    %v531 = vld [vmem:[%s2 + $0x1c8] sm:$0xff]
    %v532 = vld [vmem:[%s2 + $0x1d0] sm:$0xff]
    %v533 = vld [vmem:[%s2 + $0x1d8] sm:$0xff]
    %v534 = vld [vmem:[%s2 + $0x1e0] sm:$0xff]
    %v535 = vld [vmem:[%s2 + $0x1e8] sm:$0xff]
    %v536 = vld [vmem:[%s2 + $0x1f0] sm:$0xff]
    %v537 = vld [vmem:[%s2 + $0x1f8] sm:$0xff]
    %v538 = vld [vmem:[%s2 + $0x200] sm:$0xff]
    %v539 = vld [vmem:[%s2 + $0x208] sm:$0xff]
    %v540 = vld [vmem:[%s2 + $0x210] sm:$0xff]
    %v541 = vld [vmem:[%s2 + $0x218] sm:$0xff]
    %v542 = vld [vmem:[%s2 + $0x220] sm:$0xff]
    %v543 = vld [vmem:[%s2 + $0x228] sm:$0xff]
    %v544 = vld [vmem:[%s2 + $0x230] sm:$0xff]
    %v545 = vld [vmem:[%s2 + $0x238] sm:$0xff]
    %v546 = vld [vmem:[%s2 + $0x240] sm:$0xff]
    %v547 = vld [vmem:[%s2 + $0x248] sm:$0xff]
    %v548 = vld [vmem:[%s2 + $0x250] sm:$0xff]
    %v549 = vld [vmem:[%s2 + $0x258] sm:$0xff]
    %v550 = vld [vmem:[%s2 + $0x260] sm:$0xff]
    %v551 = vld [vmem:[%s2 + $0x268] sm:$0xff]
    %v552 = vld [vmem:[%s2 + $0x270] sm:$0xff]
    %v553 = vld [vmem:[%s2 + $0x278] sm:$0xff]
    %v554 = vld [vmem:[%s2 + $0x280] sm:$0xff]
    %v555 = vld [vmem:[%s2 + $0x288] sm:$0xff]
    %v556 = vld [vmem:[%s2 + $0x290] sm:$0xff]
    %v557 = vld [vmem:[%s2 + $0x298] sm:$0xff]
    %v558 = vld [vmem:[%s2 + $0x2a0] sm:$0xff]
    %v559 = vld [vmem:[%s2 + $0x2a8] sm:$0xff]
    %v560 = vld [vmem:[%s2 + $0x2b0] sm:$0xff]
    %v561 = vld [vmem:[%s2 + $0x2b8] sm:$0xff]
    %v562 = vld [vmem:[%s2 + $0x2c0] sm:$0xff]
    %v563 = vld [vmem:[%s2 + $0x2c8] sm:$0xff]
    %v564 = vld [vmem:[%s2 + $0x2d0] sm:$0xff]
    %v565 = vld [vmem:[%s2 + $0x2d8] sm:$0xff]
    %v566 = vld [vmem:[%s2 + $0x2e0] sm:$0xff]
    %v567 = vld [vmem:[%s2 + $0x2e8] sm:$0xff]
    %v568 = vld [vmem:[%s2 + $0x2f0] sm:$0xff]
    %v569 = vld [vmem:[%s2 + $0x2f8] sm:$0xff]
    %v570 = vld [vmem:[%s2 + $0x300] sm:$0xff]
    %v571 = vld [vmem:[%s2 + $0x308] sm:$0xff]
    %v572 = vld [vmem:[%s2 + $0x310] sm:$0xff]
    %v573 = vld [vmem:[%s2 + $0x318] sm:$0xff]
    %v574 = vld [vmem:[%s2 + $0x320] sm:$0xff]
    %v575 = vld [vmem:[%s2 + $0x328] sm:$0xff]
    %v576 = vld [vmem:[%s2 + $0x330] sm:$0xff]
    %v577 = vld [vmem:[%s2 + $0x338] sm:$0xff]
    %v578 = vld [vmem:[%s2 + $0x340] sm:$0xff]
    %v579 = vld [vmem:[%s2 + $0x348] sm:$0xff]
    %v580 = vld [vmem:[%s2 + $0x350] sm:$0xff]
    %v581 = vld [vmem:[%s2 + $0x358] sm:$0xff]
    %v583 = vsel %vm38, %v138, 0
    %v586 = vsel %vm38, %v144, 0
    %v589 = vsel %vm38, %v239, 0
    %v592 = vsel %vm38, %v245, 0
    %594 = vmatprep.subr.mxu0 %v574
    %595 = vmatpush1.msra.mxu0 %v573
    %596 = vmatprep.subr.mxu0 %v571
    %597 = vmatpush1.msra.mxu0 %v570
    %598 = vmatprep.subr.mxu0 %v568
    %599 = vmatpush1.msra.mxu0 %v567
    %600 = vmatprep.subr.mxu0 %v565
    %601 = vmatpush1.msra.mxu0 %v564
    %602 = vmatprep.subr.mxu0 %v562
    %603 = vmatpush1.msra.mxu0 %v561
    %604 = vmatprep.subr.mxu0 %v559
    %605 = vmatpush1.msra.mxu0 %v558
    %606 = vmatprep.subr.mxu0 %v556
    %607 = vmatpush1.msra.mxu0 %v555
    %608 = vmatprep.subr.mxu0 %v553
    %609 = vmatpush1.msra.mxu0 %v552
    %610 = vmatprep.subr.mxu0 %v550
    %611 = vmatpush1.msra.mxu0 %v549
    %612 = vmatprep.subr.mxu0 %v547
    %613 = vmatpush1.msra.mxu0 %v546
    %614 = vmatprep.subr.mxu0 %v544
    %615 = vmatpush1.msra.mxu0 %v543
    %616 = vmatprep.subr.mxu0 %v541
    %617 = vmatpush1.msra.mxu0 %v540
    %618 = vmatprep.subr.mxu0 %v538
    %619 = vmatpush1.msra.mxu0 %v537
    %620 = vmatprep.subr.mxu0 %v535
    %621 = vmatpush1.msra.mxu0 %v534
    %622 = vmatprep.subr.mxu0 %v532
    %623 = vmatpush1.msra.mxu0 %v531
    %624 = vmatprep.subr.mxu0 %v529
    %625 = vmatpush1.msra.mxu0 %v528
    %626 = vmatprep.subr.mxu0 0.0
    %627 = vmatpush2.msra.mxu0 0.0
    %628 = vmatprep.subr.mxu0 0.0
    %629 = vmatpush2.msra.mxu0 0.0
    %630 = vmatprep.subr.mxu0 0.0
    %631 = vmatpush2.msra.mxu0 0.0
    %632 = vmatprep.subr.mxu0 0.0
    %633 = vmatpush2.msra.mxu0 0.0
    %634 = vmatprep.subr.mxu0 0.0
    %635 = vmatpush2.msra.mxu0 0.0
    %636 = vmatprep.subr.mxu0 0.0
    %637 = vmatpush2.msra.mxu0 0.0
    %638 = vmatprep.subr.mxu0 0.0
    %639 = vmatpush2.msra.mxu0 0.0
    %640 = vmatprep.subr.mxu0 0.0
    %641 = vmatpush2.msra.mxu0 0.0
    %642 = vmatprep.subr.mxu0 0.0
    %643 = vmatpush2.msra.mxu0 0.0
    %644 = vmatprep.subr.mxu0 0.0
    %645 = vmatpush2.msra.mxu0 0.0
    %646 = vmatprep.subr.mxu0 0.0
    %647 = vmatpush2.msra.mxu0 0.0
    %648 = vmatprep.subr.mxu0 0.0
    %649 = vmatpush2.msra.mxu0 0.0
    %650 = vmatprep.subr.mxu0 0.0
    %651 = vmatpush2.msra.mxu0 0.0
    %652 = vmatprep.subr.mxu0 0.0
    %653 = vmatpush2.msra.mxu0 0.0
    %654 = vmatprep.subr.mxu0 %v580
    %655 = vmatpush2.msra.mxu0 %v579
    %656 = vmatprep.subr.mxu0 %v577
    %657 = vmatpush2.msra.mxu0 %v576
    %658 = vmatprep.mubr.f32.mxu0 %v583
    %659 = vmatmul.mubr.f32.gmra.mxu0 %v136
    %v660 = vpop.f32.mrf.mxu0
    %v661 = vadd.f32 0.0, %v660
    %v662 = vpop.f32.mrf.mxu0
    %v663 = vadd.f32 0.0, %v662
    %664 = vmatprep.mubr.f32.mxu0 %v586
    %665 = vmatmul.mubr.f32.gmra.mxu0 %v142
    %v666 = vpop.f32.mrf.mxu0
    %v667 = vadd.f32 0.0, %v666
    %v668 = vpop.f32.mrf.mxu0
    %v669 = vadd.f32 0.0, %v668
    %670 = vmatprep.mubr.f32.mxu0 %v589
    %671 = vmatmul.mubr.f32.gmra.mxu0 %v237
    %v672 = vpop.f32.mrf.mxu0
    %v673 = vadd.f32 0.0, %v672
    %v674 = vpop.f32.mrf.mxu0
    %v675 = vadd.f32 0.0, %v674
    %676 = vmatprep.mubr.f32.mxu0 %v592
    %677 = vmatmul.mubr.f32.gmra.mxu0 %v243
    %v678 = vpop.f32.mrf.mxu0
    %v679 = vadd.f32 0.0, %v678
    %v680 = vpop.f32.mrf.mxu0
    %v681 = vadd.f32 0.0, %v680
    %682 = vdwg.mxu0
    %683 = vmatprep.subr.mxu0 0.0
    %684 = vmatpush1.msra.mxu0 %v575
    %685 = vmatprep.subr.mxu0 0.0
    %686 = vmatpush1.msra.mxu0 %v572
    %687 = vmatprep.subr.mxu0 0.0
    %688 = vmatpush1.msra.mxu0 %v569
    %689 = vmatprep.subr.mxu0 0.0
    %690 = vmatpush1.msra.mxu0 %v566
    %691 = vmatprep.subr.mxu0 0.0
    %692 = vmatpush1.msra.mxu0 %v563
    %693 = vmatprep.subr.mxu0 0.0
    %694 = vmatpush1.msra.mxu0 %v560
    %695 = vmatprep.subr.mxu0 0.0
    %696 = vmatpush1.msra.mxu0 %v557
    %697 = vmatprep.subr.mxu0 0.0
    %698 = vmatpush1.msra.mxu0 %v554
    %699 = vmatprep.subr.mxu0 0.0
    %700 = vmatpush1.msra.mxu0 %v551
    %701 = vmatprep.subr.mxu0 0.0
    %702 = vmatpush1.msra.mxu0 %v548
    %703 = vmatprep.subr.mxu0 0.0
    %704 = vmatpush1.msra.mxu0 %v545
    %705 = vmatprep.subr.mxu0 0.0
    %706 = vmatpush1.msra.mxu0 %v542
    %707 = vmatprep.subr.mxu0 0.0
    %708 = vmatpush1.msra.mxu0 %v539
    %709 = vmatprep.subr.mxu0 0.0
    %710 = vmatpush1.msra.mxu0 %v536
    %711 = vmatprep.subr.mxu0 0.0
    %712 = vmatpush1.msra.mxu0 %v533
    %713 = vmatprep.subr.mxu0 0.0
    %714 = vmatpush1.msra.mxu0 %v530
    %715 = vmatprep.subr.mxu0 0.0
    %716 = vmatpush2.msra.mxu0 0.0
    %717 = vmatprep.subr.mxu0 0.0
    %718 = vmatpush2.msra.mxu0 0.0
    %719 = vmatprep.subr.mxu0 0.0
    %720 = vmatpush2.msra.mxu0 0.0
    %721 = vmatprep.subr.mxu0 0.0
    %722 = vmatpush2.msra.mxu0 0.0
    %723 = vmatprep.subr.mxu0 0.0
    %724 = vmatpush2.msra.mxu0 0.0
    %725 = vmatprep.subr.mxu0 0.0
    %726 = vmatpush2.msra.mxu0 0.0
    %727 = vmatprep.subr.mxu0 0.0
    %728 = vmatpush2.msra.mxu0 0.0
    %729 = vmatprep.subr.mxu0 0.0
    %730 = vmatpush2.msra.mxu0 0.0
    %731 = vmatprep.subr.mxu0 0.0
    %732 = vmatpush2.msra.mxu0 0.0
    %733 = vmatprep.subr.mxu0 0.0
    %734 = vmatpush2.msra.mxu0 0.0
    %735 = vmatprep.subr.mxu0 0.0
    %736 = vmatpush2.msra.mxu0 0.0
    %737 = vmatprep.subr.mxu0 0.0
    %738 = vmatpush2.msra.mxu0 0.0
    %739 = vmatprep.subr.mxu0 0.0
    %740 = vmatpush2.msra.mxu0 0.0
    %741 = vmatprep.subr.mxu0 0.0
    %742 = vmatpush2.msra.mxu0 0.0
    %743 = vmatprep.subr.mxu0 0.0
    %744 = vmatpush2.msra.mxu0 %v581
    %745 = vmatprep.subr.mxu0 0.0
    %746 = vmatpush2.msra.mxu0 %v578
    %747 = vmatprep.mubr.f32.mxu0 %v583
    %748 = vmatmul.mubr.f32.gmra.mxu0 %v136
    %v749 = vpop.f32.mrf.mxu0
    %v750 = vadd.f32 0.0, %v749
    %v751 = vpop.f32.mrf.mxu0
    %752 = vmatprep.mubr.f32.mxu0 %v586
    %753 = vmatmul.mubr.f32.gmra.mxu0 %v142
    %v754 = vpop.f32.mrf.mxu0
    %v755 = vadd.f32 0.0, %v754
    %v756 = vpop.f32.mrf.mxu0
    %757 = vmatprep.mubr.f32.mxu0 %v589
    %758 = vmatmul.mubr.f32.gmra.mxu0 %v237
    %v759 = vpop.f32.mrf.mxu0
    %v760 = vadd.f32 0.0, %v759
    %v761 = vpop.f32.mrf.mxu0
    %762 = vmatprep.mubr.f32.mxu0 %v592
    %763 = vmatmul.mubr.f32.gmra.mxu0 %v243
    %v764 = vpop.f32.mrf.mxu0
    %v765 = vadd.f32 0.0, %v764
    %v766 = vpop.f32.mrf.mxu0
    %767 = vdwg.mxu0
    %v768 = vadd.f32 %v516, %v661
    %v769 = vadd.f32 %v517, %v663
    %v770 = vadd.f32 %v518, %v750
    %v771 = vadd.f32 %v519, %v667
    %v772 = vadd.f32 %v520, %v669
    %v773 = vadd.f32 %v521, %v755
    %v774 = vadd.f32 %v522, %v673
    %v775 = vadd.f32 %v523, %v675
    %v776 = vadd.f32 %v524, %v760
    %v777 = vadd.f32 %v525, %v679
    %v778 = vadd.f32 %v526, %v681
    %v779 = vadd.f32 %v527, %v765
    %v780 = vld [vmem:[%s2 + $0x360] sm:$0xff]
    %v781 = vld [vmem:[%s2 + $0x368] sm:$0xff]
    %v782 = vld [vmem:[%s2 + $0x370] sm:$0xff]
    %v783 = vld [vmem:[%s2 + $0x378] sm:$0xff]
    %v784 = vld [vmem:[%s2 + $0x380] sm:$0xff]
    %v785 = vld [vmem:[%s2 + $0x388] sm:$0xff]
    %v786 = vld [vmem:[%s2 + $0x390] sm:$0xff]
    %v787 = vld [vmem:[%s2 + $0x398] sm:$0xff]
    %v788 = vld [vmem:[%s2 + $0x3a0] sm:$0xff]
    %v789 = vld [vmem:[%s2 + $0x3a8] sm:$0xff]
    %v790 = vld [vmem:[%s2 + $0x3b0] sm:$0xff]
    %v791 = vld [vmem:[%s2 + $0x3b8] sm:$0xff]
    %v792 = vld [vmem:[%s2 + $0x3c0] sm:$0xff]
    %v793 = vld [vmem:[%s2 + $0x3c8] sm:$0xff]
    %v794 = vld [vmem:[%s2 + $0x3d0] sm:$0xff]
    %v795 = vld [vmem:[%s2 + $0x3d8] sm:$0xff]
    %v796 = vld [vmem:[%s2 + $0x3e0] sm:$0xff]
    %v797 = vld [vmem:[%s2 + $0x3e8] sm:$0xff]
    %v798 = vld [vmem:[%s2 + $0x3f0] sm:$0xff]
    %v799 = vld [vmem:[%s2 + $0x3f8] sm:$0xff]
    %v800 = vld [vmem:[%s2 + $0x400] sm:$0xff]
    %v801 = vld [vmem:[%s2 + $0x408] sm:$0xff]
    %v802 = vld [vmem:[%s2 + $0x410] sm:$0xff]
    %v803 = vld [vmem:[%s2 + $0x418] sm:$0xff]
    %v804 = vld [vmem:[%s2 + $0x420] sm:$0xff]
    %v805 = vld [vmem:[%s2 + $0x428] sm:$0xff]
    %v806 = vld [vmem:[%s2 + $0x430] sm:$0xff]
    %v807 = vld [vmem:[%s2 + $0x438] sm:$0xff]
    %v808 = vld [vmem:[%s2 + $0x440] sm:$0xff]
    %v809 = vld [vmem:[%s2 + $0x448] sm:$0xff]
    %v810 = vld [vmem:[%s2 + $0x450] sm:$0xff]
    %v811 = vld [vmem:[%s2 + $0x458] sm:$0xff]
    %v812 = vld [vmem:[%s2 + $0x460] sm:$0xff]
    %v813 = vld [vmem:[%s2 + $0x468] sm:$0xff]
    %v814 = vld [vmem:[%s2 + $0x470] sm:$0xff]
    %v815 = vld [vmem:[%s2 + $0x478] sm:$0xff]
    %v816 = vld [vmem:[%s2 + $0x480] sm:$0xff]
    %v817 = vld [vmem:[%s2 + $0x488] sm:$0xff]
    %v818 = vld [vmem:[%s2 + $0x490] sm:$0xff]
    %v819 = vld [vmem:[%s2 + $0x498] sm:$0xff]
    %v820 = vld [vmem:[%s2 + $0x4a0] sm:$0xff]
    %v821 = vld [vmem:[%s2 + $0x4a8] sm:$0xff]
    %v822 = vld [vmem:[%s2 + $0x4b0] sm:$0xff]
    %v823 = vld [vmem:[%s2 + $0x4b8] sm:$0xff]
    %v824 = vld [vmem:[%s2 + $0x4c0] sm:$0xff]
    %v825 = vld [vmem:[%s2 + $0x4c8] sm:$0xff]
    %v826 = vld [vmem:[%s2 + $0x4d0] sm:$0xff]
    %v827 = vld [vmem:[%s2 + $0x4d8] sm:$0xff]
    %v828 = vld [vmem:[%s2 + $0x4e0] sm:$0xff]
    %v829 = vld [vmem:[%s2 + $0x4e8] sm:$0xff]
    %v830 = vld [vmem:[%s2 + $0x4f0] sm:$0xff]
    %v831 = vld [vmem:[%s2 + $0x4f8] sm:$0xff]
    %v832 = vld [vmem:[%s2 + $0x500] sm:$0xff]
    %v833 = vld [vmem:[%s2 + $0x508] sm:$0xff]
    %v835 = vsel %vm38, %v150, 0
    %v838 = vsel %vm38, %v156, 0
    %v841 = vsel %vm38, %v251, 0
    %v844 = vsel %vm38, %v257, 0
    %846 = vmatprep.subr.mxu0 %v826
    %847 = vmatpush1.msra.mxu0 %v825
    %848 = vmatprep.subr.mxu0 %v823
    %849 = vmatpush1.msra.mxu0 %v822
    %850 = vmatprep.subr.mxu0 %v820
    %851 = vmatpush1.msra.mxu0 %v819
    %852 = vmatprep.subr.mxu0 %v817
    %853 = vmatpush1.msra.mxu0 %v816
    %854 = vmatprep.subr.mxu0 %v814
    %855 = vmatpush1.msra.mxu0 %v813
    %856 = vmatprep.subr.mxu0 %v811
    %857 = vmatpush1.msra.mxu0 %v810
    %858 = vmatprep.subr.mxu0 %v808
    %859 = vmatpush1.msra.mxu0 %v807
    %860 = vmatprep.subr.mxu0 %v805
    %861 = vmatpush1.msra.mxu0 %v804
    %862 = vmatprep.subr.mxu0 %v802
    %863 = vmatpush1.msra.mxu0 %v801
    %864 = vmatprep.subr.mxu0 %v799
    %865 = vmatpush1.msra.mxu0 %v798
    %866 = vmatprep.subr.mxu0 %v796
    %867 = vmatpush1.msra.mxu0 %v795
    %868 = vmatprep.subr.mxu0 %v793
    %869 = vmatpush1.msra.mxu0 %v792
    %870 = vmatprep.subr.mxu0 %v790
    %871 = vmatpush1.msra.mxu0 %v789
    %872 = vmatprep.subr.mxu0 %v787
    %873 = vmatpush1.msra.mxu0 %v786
    %874 = vmatprep.subr.mxu0 %v784
    %875 = vmatpush1.msra.mxu0 %v783
    %876 = vmatprep.subr.mxu0 %v781
    %877 = vmatpush1.msra.mxu0 %v780
    %878 = vmatprep.subr.mxu0 0.0
    %879 = vmatpush2.msra.mxu0 0.0
    %880 = vmatprep.subr.mxu0 0.0
    %881 = vmatpush2.msra.mxu0 0.0
    %882 = vmatprep.subr.mxu0 0.0
    %883 = vmatpush2.msra.mxu0 0.0
    %884 = vmatprep.subr.mxu0 0.0
    %885 = vmatpush2.msra.mxu0 0.0
    %886 = vmatprep.subr.mxu0 0.0
    %887 = vmatpush2.msra.mxu0 0.0
    %888 = vmatprep.subr.mxu0 0.0
    %889 = vmatpush2.msra.mxu0 0.0
    %890 = vmatprep.subr.mxu0 0.0
    %891 = vmatpush2.msra.mxu0 0.0
    %892 = vmatprep.subr.mxu0 0.0
    %893 = vmatpush2.msra.mxu0 0.0
    %894 = vmatprep.subr.mxu0 0.0
    %895 = vmatpush2.msra.mxu0 0.0
    %896 = vmatprep.subr.mxu0 0.0
    %897 = vmatpush2.msra.mxu0 0.0
    %898 = vmatprep.subr.mxu0 0.0
    %899 = vmatpush2.msra.mxu0 0.0
    %900 = vmatprep.subr.mxu0 0.0
    %901 = vmatpush2.msra.mxu0 0.0
    %902 = vmatprep.subr.mxu0 0.0
    %903 = vmatpush2.msra.mxu0 0.0
    %904 = vmatprep.subr.mxu0 0.0
    %905 = vmatpush2.msra.mxu0 0.0
    %906 = vmatprep.subr.mxu0 %v832
    %907 = vmatpush2.msra.mxu0 %v831
    %908 = vmatprep.subr.mxu0 %v829
    %909 = vmatpush2.msra.mxu0 %v828
    %910 = vmatprep.mubr.f32.mxu0 %v835
    %911 = vmatmul.mubr.f32.gmra.mxu0 %v148
    %v912 = vpop.f32.mrf.mxu0
    %v913 = vadd.f32 0.0, %v912
    %v914 = vpop.f32.mrf.mxu0
    %v915 = vadd.f32 0.0, %v914
    %916 = vmatprep.mubr.f32.mxu0 %v838
    %917 = vmatmul.mubr.f32.gmra.mxu0 %v154
    %v918 = vpop.f32.mrf.mxu0
    %v919 = vadd.f32 0.0, %v918
    %v920 = vpop.f32.mrf.mxu0
    %v921 = vadd.f32 0.0, %v920
    %922 = vmatprep.mubr.f32.mxu0 %v841
    %923 = vmatmul.mubr.f32.gmra.mxu0 %v249
    %v924 = vpop.f32.mrf.mxu0
    %v925 = vadd.f32 0.0, %v924
    %v926 = vpop.f32.mrf.mxu0
    %v927 = vadd.f32 0.0, %v926
    %928 = vmatprep.mubr.f32.mxu0 %v844
    %929 = vmatmul.mubr.f32.gmra.mxu0 %v255
    %v930 = vpop.f32.mrf.mxu0
    %v931 = vadd.f32 0.0, %v930
    %v932 = vpop.f32.mrf.mxu0
    %v933 = vadd.f32 0.0, %v932
    %934 = vdwg.mxu0
    %935 = vmatprep.subr.mxu0 0.0
    %936 = vmatpush1.msra.mxu0 %v827
    %937 = vmatprep.subr.mxu0 0.0
    %938 = vmatpush1.msra.mxu0 %v824
    %939 = vmatprep.subr.mxu0 0.0
    %940 = vmatpush1.msra.mxu0 %v821
    %941 = vmatprep.subr.mxu0 0.0
    %942 = vmatpush1.msra.mxu0 %v818
    %943 = vmatprep.subr.mxu0 0.0
    %944 = vmatpush1.msra.mxu0 %v815
    %945 = vmatprep.subr.mxu0 0.0
    %946 = vmatpush1.msra.mxu0 %v812
    %947 = vmatprep.subr.mxu0 0.0
    %948 = vmatpush1.msra.mxu0 %v809
    %949 = vmatprep.subr.mxu0 0.0
    %950 = vmatpush1.msra.mxu0 %v806
    %951 = vmatprep.subr.mxu0 0.0
    %952 = vmatpush1.msra.mxu0 %v803
    %953 = vmatprep.subr.mxu0 0.0
    %954 = vmatpush1.msra.mxu0 %v800
    %955 = vmatprep.subr.mxu0 0.0
    %956 = vmatpush1.msra.mxu0 %v797
    %957 = vmatprep.subr.mxu0 0.0
    %958 = vmatpush1.msra.mxu0 %v794
    %959 = vmatprep.subr.mxu0 0.0
    %960 = vmatpush1.msra.mxu0 %v791
    %961 = vmatprep.subr.mxu0 0.0
    %962 = vmatpush1.msra.mxu0 %v788
    %963 = vmatprep.subr.mxu0 0.0
    %964 = vmatpush1.msra.mxu0 %v785
    %965 = vmatprep.subr.mxu0 0.0
    %966 = vmatpush1.msra.mxu0 %v782
    %967 = vmatprep.subr.mxu0 0.0
    %968 = vmatpush2.msra.mxu0 0.0
    %969 = vmatprep.subr.mxu0 0.0
    %970 = vmatpush2.msra.mxu0 0.0
    %971 = vmatprep.subr.mxu0 0.0
    %972 = vmatpush2.msra.mxu0 0.0
    %973 = vmatprep.subr.mxu0 0.0
    %974 = vmatpush2.msra.mxu0 0.0
    %975 = vmatprep.subr.mxu0 0.0
    %976 = vmatpush2.msra.mxu0 0.0
    %977 = vmatprep.subr.mxu0 0.0
    %978 = vmatpush2.msra.mxu0 0.0
    %979 = vmatprep.subr.mxu0 0.0
    %980 = vmatpush2.msra.mxu0 0.0
    %981 = vmatprep.subr.mxu0 0.0
    %982 = vmatpush2.msra.mxu0 0.0
    %983 = vmatprep.subr.mxu0 0.0
    %984 = vmatpush2.msra.mxu0 0.0
    %985 = vmatprep.subr.mxu0 0.0
    %986 = vmatpush2.msra.mxu0 0.0
    %987 = vmatprep.subr.mxu0 0.0
    %988 = vmatpush2.msra.mxu0 0.0
    %989 = vmatprep.subr.mxu0 0.0
    %990 = vmatpush2.msra.mxu0 0.0
    %991 = vmatprep.subr.mxu0 0.0
    %992 = vmatpush2.msra.mxu0 0.0
    %993 = vmatprep.subr.mxu0 0.0
    %994 = vmatpush2.msra.mxu0 0.0
    %995 = vmatprep.subr.mxu0 0.0
    %996 = vmatpush2.msra.mxu0 %v833
    %997 = vmatprep.subr.mxu0 0.0
    %998 = vmatpush2.msra.mxu0 %v830
    %999 = vmatprep.mubr.f32.mxu0 %v835
    %1000 = vmatmul.mubr.f32.gmra.mxu0 %v148
    %v1001 = vpop.f32.mrf.mxu0
    %v1002 = vadd.f32 0.0, %v1001
    %v1003 = vpop.f32.mrf.mxu0
    %1004 = vmatprep.mubr.f32.mxu0 %v838
    %1005 = vmatmul.mubr.f32.gmra.mxu0 %v154
    %v1006 = vpop.f32.mrf.mxu0
    %v1007 = vadd.f32 0.0, %v1006
    %v1008 = vpop.f32.mrf.mxu0
    %1009 = vmatprep.mubr.f32.mxu0 %v841
    %1010 = vmatmul.mubr.f32.gmra.mxu0 %v249
    %v1011 = vpop.f32.mrf.mxu0
    %v1012 = vadd.f32 0.0, %v1011
    %v1013 = vpop.f32.mrf.mxu0
    %1014 = vmatprep.mubr.f32.mxu0 %v844
    %1015 = vmatmul.mubr.f32.gmra.mxu0 %v255
    %v1016 = vpop.f32.mrf.mxu0
    %v1017 = vadd.f32 0.0, %v1016
    %v1018 = vpop.f32.mrf.mxu0
    %1019 = vdwg.mxu0
    %v1020 = vadd.f32 %v768, %v913
    %v1021 = vadd.f32 %v769, %v915
    %v1022 = vadd.f32 %v770, %v1002
    %v1023 = vadd.f32 %v771, %v919
    %v1024 = vadd.f32 %v772, %v921
    %v1025 = vadd.f32 %v773, %v1007
    %v1026 = vadd.f32 %v774, %v925
    %v1027 = vadd.f32 %v775, %v927
    %v1028 = vadd.f32 %v776, %v1012
    %v1029 = vadd.f32 %v777, %v931
    %v1030 = vadd.f32 %v778, %v933
    %v1031 = vadd.f32 %v779, %v1017
    %v1032 = vxor.u32 %v1020, 2147483648
    %v1033 = vxor.u32 %v1023, 2147483648
    %v1034 = vxor.u32 %v1026, 2147483648
    %v1035 = vxor.u32 %v1029, 2147483648
    %v1036 = vmul.f32 %v1032, 1.442695
    %v1037 = vpow.pop %v1036
    %v1038 = vmul.f32 %v1033, 1.442695
    %v1039 = vpow.pop %v1038
    %v1040 = vmul.f32 %v1034, 1.442695
    %v1041 = vpow.pop %v1040
    %v1042 = vmul.f32 %v1035, 1.442695
    %v1043 = vpow.pop %v1042
    %v1044 = vadd.f32 %v1037, 1.0
    %v1045 = vadd.f32 %v1039, 1.0
    %v1046 = vadd.f32 %v1041, 1.0
    %v1047 = vadd.f32 %v1043, 1.0
    %v1048 = vrcp.pop %v1044
    %v1049 = vmul.f32 1.0, %v1048
    %v1050 = vrcp.pop %v1045
    %v1051 = vmul.f32 1.0, %v1050
    %v1052 = vrcp.pop %v1046
    %v1053 = vmul.f32 1.0, %v1052
    %v1054 = vrcp.pop %v1047
    %v1055 = vmul.f32 1.0, %v1054
    %v1056 = vxor.u32 %v1021, 2147483648
    %v1057 = vxor.u32 %v1022, 2147483648
    %v1058 = vxor.u32 %v1024, 2147483648
    %v1059 = vxor.u32 %v1025, 2147483648
    %v1060 = vxor.u32 %v1027, 2147483648
    %v1061 = vxor.u32 %v1028, 2147483648
    %v1062 = vxor.u32 %v1030, 2147483648
    %v1063 = vxor.u32 %v1031, 2147483648
    %v1064 = vmul.f32 %v1056, 1.442695
    %v1065 = vpow.pop %v1064
    %v1066 = vmul.f32 %v1057, 1.442695
    %v1067 = vpow.pop %v1066
    %v1068 = vmul.f32 %v1058, 1.442695
    %v1069 = vpow.pop %v1068
    %v1070 = vmul.f32 %v1059, 1.442695
    %v1071 = vpow.pop %v1070
    %v1072 = vmul.f32 %v1060, 1.442695
    %v1073 = vpow.pop %v1072
    %v1074 = vmul.f32 %v1061, 1.442695
    %v1075 = vpow.pop %v1074
    %v1076 = vmul.f32 %v1062, 1.442695
    %v1077 = vpow.pop %v1076
    %v1078 = vmul.f32 %v1063, 1.442695
    %v1079 = vpow.pop %v1078
    %v1080 = vadd.f32 %v1065, 1.0
    %v1081 = vadd.f32 %v1067, 1.0
    %v1082 = vadd.f32 %v1069, 1.0
    %v1083 = vadd.f32 %v1071, 1.0
    %v1084 = vadd.f32 %v1073, 1.0
    %v1085 = vadd.f32 %v1075, 1.0
    %v1086 = vadd.f32 %v1077, 1.0
    %v1087 = vadd.f32 %v1079, 1.0
    %v1088 = vrcp.pop %v1080
    %v1089 = vmul.f32 1.0, %v1088
    %v1090 = vrcp.pop %v1081
    %v1091 = vmul.f32 1.0, %v1090
    %v1092 = vrcp.pop %v1082
    %v1093 = vmul.f32 1.0, %v1092
    %v1094 = vrcp.pop %v1083
    %v1095 = vmul.f32 1.0, %v1094
    %v1096 = vrcp.pop %v1084
    %v1097 = vmul.f32 1.0, %v1096
    %v1098 = vrcp.pop %v1085
    %v1099 = vmul.f32 1.0, %v1098
    %v1100 = vrcp.pop %v1086
    %v1101 = vmul.f32 1.0, %v1100
    %v1102 = vrcp.pop %v1087
    %v1103 = vmul.f32 1.0, %v1102
    %v1104 = vlaneseq
    %v1105 = vand.u32 %v1104, 127
    %v1106 = vadd.s32 %v1105, 128
    %vm1107 = vcmp.lt.s32.totalorder %v1105, 128
    %vm1108 = vcmp.lt.s32.totalorder %v1106, 128
    %v1109 = vsel %vm1107, %v1089, 1.0
    %v1110 = vsel %vm1108, %v1091, 1.0
    %v1111 = vsel %vm1107, %v1093, 1.0
    %v1112 = vsel %vm1108, %v1095, 1.0
    %v1113 = vsel %vm1107, %v1097, 1.0
    %v1114 = vsel %vm1108, %v1099, 1.0
    %v1115 = vsel %vm1107, %v1101, 1.0
    %v1116 = vsel %vm1108, %v1103, 1.0
    %v1117 = vmul.f32 %v30, %v1109
    %v1118 = vmul.f32 %v31, %v1110
    %v1119 = vmul.f32 %v32, %v1111
    %v1120 = vmul.f32 %v33, %v1112
    %v1121 = vmul.f32 %v34, %v1113
    %v1122 = vmul.f32 %v35, %v1114
    %v1123 = vmul.f32 %v36, %v1115
    %v1124 = vmul.f32 %v37, %v1116
    %1125 = vmatprep.subr.mxu0 0.0
    %1126 = vmatpush1.msra.mxu0 0.0
    %1127 = vmatprep.subr.mxu0 0.0
    %1128 = vmatpush1.msra.mxu0 0.0
    %1129 = vmatprep.subr.mxu0 0.0
    %1130 = vmatpush1.msra.mxu0 0.0
    %1131 = vmatprep.subr.mxu0 0.0
    %1132 = vmatpush1.msra.mxu0 0.0
    %1133 = vmatprep.subr.mxu0 0.0
    %1134 = vmatpush1.msra.mxu0 0.0
    %1135 = vmatprep.subr.mxu0 0.0
    %1136 = vmatpush1.msra.mxu0 0.0
    %1137 = vmatprep.subr.mxu0 0.0
    %1138 = vmatpush1.msra.mxu0 0.0
    %1139 = vmatprep.subr.mxu0 0.0
    %1140 = vmatpush1.msra.mxu0 0.0
    %1141 = vmatprep.subr.mxu0 0.0
    %1142 = vmatpush1.msra.mxu0 0.0
    %1143 = vmatprep.subr.mxu0 0.0
    %1144 = vmatpush1.msra.mxu0 0.0
    %1145 = vmatprep.subr.mxu0 0.0
    %1146 = vmatpush1.msra.mxu0 0.0
    %1147 = vmatprep.subr.mxu0 0.0
    %1148 = vmatpush1.msra.mxu0 0.0
    %1149 = vmatprep.subr.mxu0 0.0
    %1150 = vmatpush1.msra.mxu0 0.0
    %1151 = vmatprep.subr.mxu0 0.0
    %1152 = vmatpush1.msra.mxu0 0.0
    %1153 = vmatprep.subr.mxu0 %v1120
    %1154 = vmatpush1.msra.mxu0 %v1119
    %1155 = vmatprep.subr.mxu0 %v1118
    %1156 = vmatpush1.msra.mxu0 %v1117
    %1157 = vmatprep.subr.mxu0 0.0
    %1158 = vmatpush2.msra.mxu0 0.0
    %1159 = vmatprep.subr.mxu0 0.0
    %1160 = vmatpush2.msra.mxu0 0.0
    %1161 = vmatprep.subr.mxu0 0.0
    %1162 = vmatpush2.msra.mxu0 0.0
    %1163 = vmatprep.subr.mxu0 0.0
    %1164 = vmatpush2.msra.mxu0 0.0
    %1165 = vmatprep.subr.mxu0 0.0
    %1166 = vmatpush2.msra.mxu0 0.0
    %1167 = vmatprep.subr.mxu0 0.0
    %1168 = vmatpush2.msra.mxu0 0.0
    %1169 = vmatprep.subr.mxu0 0.0
    %1170 = vmatpush2.msra.mxu0 0.0
    %1171 = vmatprep.subr.mxu0 0.0
    %1172 = vmatpush2.msra.mxu0 0.0
    %1173 = vmatprep.subr.mxu0 0.0
    %1174 = vmatpush2.msra.mxu0 0.0
    %1175 = vmatprep.subr.mxu0 0.0
    %1176 = vmatpush2.msra.mxu0 0.0
    %1177 = vmatprep.subr.mxu0 0.0
    %1178 = vmatpush2.msra.mxu0 0.0
    %1179 = vmatprep.subr.mxu0 0.0
    %1180 = vmatpush2.msra.mxu0 0.0
    %1181 = vmatprep.subr.mxu0 0.0
    %1182 = vmatpush2.msra.mxu0 0.0
    %1183 = vmatprep.subr.mxu0 0.0
    %1184 = vmatpush2.msra.mxu0 0.0
    %1185 = vmatprep.subr.mxu0 0.0
    %1186 = vmatpush2.msra.mxu0 0.0
    %1187 = vmatprep.subr.mxu0 0.0
    %1188 = vmatpush2.msra.mxu0 0.0
    %1189 = vmatprep.mubr.f32.mxu0 0.0
    %1190 = vmatmul.mubr.f32.gmra.mxu0 %v40
    %v1191 = vpop.f32.mrf.mxu0
    %v1192 = vadd.f32 0.0, %v1191
    %v1193 = vpop.f32.mrf.mxu0
    %v1194 = vadd.f32 0.0, %v1193
    %1195 = vmatprep.mubr.f32.mxu0 0.0
    %1196 = vmatmul.mubr.f32.gmra.mxu0 %v43
    %v1197 = vpop.f32.mrf.mxu0
    %v1198 = vadd.f32 0.0, %v1197
    %v1199 = vpop.f32.mrf.mxu0
    %v1200 = vadd.f32 0.0, %v1199
    %1201 = vmatprep.mubr.f32.mxu0 0.0
    %1202 = vmatmul.mubr.f32.gmra.mxu0 %v46
    %v1203 = vpop.f32.mrf.mxu0
    %v1204 = vadd.f32 0.0, %v1203
    %v1205 = vpop.f32.mrf.mxu0
    %v1206 = vadd.f32 0.0, %v1205
    %1207 = vmatprep.mubr.f32.mxu0 0.0
    %1208 = vmatmul.mubr.f32.gmra.mxu0 %v49
    %v1209 = vpop.f32.mrf.mxu0
    %v1210 = vadd.f32 0.0, %v1209
    %v1211 = vpop.f32.mrf.mxu0
    %v1212 = vadd.f32 0.0, %v1211
    %1213 = vmatprep.mubr.f32.mxu0 0.0
    %1214 = vmatmul.mubr.f32.gmra.mxu0 %v52
    %v1215 = vpop.f32.mrf.mxu0
    %v1216 = vadd.f32 0.0, %v1215
    %v1217 = vpop.f32.mrf.mxu0
    %v1218 = vadd.f32 0.0, %v1217
    %1219 = vmatprep.mubr.f32.mxu0 0.0
    %1220 = vmatmul.mubr.f32.gmra.mxu0 %v55
    %v1221 = vpop.f32.mrf.mxu0
    %v1222 = vadd.f32 0.0, %v1221
    %v1223 = vpop.f32.mrf.mxu0
    %v1224 = vadd.f32 0.0, %v1223
    %1225 = vdwg.mxu0
    %1226 = vmatprep.subr.mxu0 0.0
    %1227 = vmatpush1.msra.mxu0 0.0
    %1228 = vmatprep.subr.mxu0 0.0
    %1229 = vmatpush1.msra.mxu0 0.0
    %1230 = vmatprep.subr.mxu0 0.0
    %1231 = vmatpush1.msra.mxu0 0.0
    %1232 = vmatprep.subr.mxu0 0.0
    %1233 = vmatpush1.msra.mxu0 0.0
    %1234 = vmatprep.subr.mxu0 0.0
    %1235 = vmatpush1.msra.mxu0 0.0
    %1236 = vmatprep.subr.mxu0 0.0
    %1237 = vmatpush1.msra.mxu0 0.0
    %1238 = vmatprep.subr.mxu0 0.0
    %1239 = vmatpush1.msra.mxu0 0.0
    %1240 = vmatprep.subr.mxu0 0.0
    %1241 = vmatpush1.msra.mxu0 0.0
    %1242 = vmatprep.subr.mxu0 0.0
    %1243 = vmatpush1.msra.mxu0 0.0
    %1244 = vmatprep.subr.mxu0 0.0
    %1245 = vmatpush1.msra.mxu0 0.0
    %1246 = vmatprep.subr.mxu0 0.0
    %1247 = vmatpush1.msra.mxu0 0.0
    %1248 = vmatprep.subr.mxu0 0.0
    %1249 = vmatpush1.msra.mxu0 0.0
    %1250 = vmatprep.subr.mxu0 0.0
    %1251 = vmatpush1.msra.mxu0 0.0
    %1252 = vmatprep.subr.mxu0 0.0
    %1253 = vmatpush1.msra.mxu0 0.0
    %1254 = vmatprep.subr.mxu0 %v1124
    %1255 = vmatpush1.msra.mxu0 %v1123
    %1256 = vmatprep.subr.mxu0 %v1122
    %1257 = vmatpush1.msra.mxu0 %v1121
    %1258 = vmatprep.subr.mxu0 0.0
    %1259 = vmatpush2.msra.mxu0 0.0
    %1260 = vmatprep.subr.mxu0 0.0
    %1261 = vmatpush2.msra.mxu0 0.0
    %1262 = vmatprep.subr.mxu0 0.0
    %1263 = vmatpush2.msra.mxu0 0.0
    %1264 = vmatprep.subr.mxu0 0.0
    %1265 = vmatpush2.msra.mxu0 0.0
    %1266 = vmatprep.subr.mxu0 0.0
    %1267 = vmatpush2.msra.mxu0 0.0
    %1268 = vmatprep.subr.mxu0 0.0
    %1269 = vmatpush2.msra.mxu0 0.0
    %1270 = vmatprep.subr.mxu0 0.0
    %1271 = vmatpush2.msra.mxu0 0.0
    %1272 = vmatprep.subr.mxu0 0.0
    %1273 = vmatpush2.msra.mxu0 0.0
    %1274 = vmatprep.subr.mxu0 0.0
    %1275 = vmatpush2.msra.mxu0 0.0
    %1276 = vmatprep.subr.mxu0 0.0
    %1277 = vmatpush2.msra.mxu0 0.0
    %1278 = vmatprep.subr.mxu0 0.0
    %1279 = vmatpush2.msra.mxu0 0.0
    %1280 = vmatprep.subr.mxu0 0.0
    %1281 = vmatpush2.msra.mxu0 0.0
    %1282 = vmatprep.subr.mxu0 0.0
    %1283 = vmatpush2.msra.mxu0 0.0
    %1284 = vmatprep.subr.mxu0 0.0
    %1285 = vmatpush2.msra.mxu0 0.0
    %1286 = vmatprep.subr.mxu0 0.0
    %1287 = vmatpush2.msra.mxu0 0.0
    %1288 = vmatprep.subr.mxu0 0.0
    %1289 = vmatpush2.msra.mxu0 0.0
    %1290 = vmatprep.mubr.f32.mxu0 0.0
    %1291 = vmatmul.mubr.f32.gmra.mxu0 %v40
    %v1292 = vpop.f32.mrf.mxu0
    %v1293 = vadd.f32 0.0, %v1292
    %v1294 = vpop.f32.mrf.mxu0
    %v1295 = vadd.f32 0.0, %v1294
    %1296 = vmatprep.mubr.f32.mxu0 0.0
    %1297 = vmatmul.mubr.f32.gmra.mxu0 %v43
    %v1298 = vpop.f32.mrf.mxu0
    %v1299 = vadd.f32 0.0, %v1298
    %v1300 = vpop.f32.mrf.mxu0
    %v1301 = vadd.f32 0.0, %v1300
    %1302 = vmatprep.mubr.f32.mxu0 0.0
    %1303 = vmatmul.mubr.f32.gmra.mxu0 %v46
    %v1304 = vpop.f32.mrf.mxu0
    %v1305 = vadd.f32 0.0, %v1304
    %v1306 = vpop.f32.mrf.mxu0
    %v1307 = vadd.f32 0.0, %v1306
    %1308 = vmatprep.mubr.f32.mxu0 0.0
    %1309 = vmatmul.mubr.f32.gmra.mxu0 %v49
    %v1310 = vpop.f32.mrf.mxu0
    %v1311 = vadd.f32 0.0, %v1310
    %v1312 = vpop.f32.mrf.mxu0
    %v1313 = vadd.f32 0.0, %v1312
    %1314 = vmatprep.mubr.f32.mxu0 0.0
    %1315 = vmatmul.mubr.f32.gmra.mxu0 %v52
    %v1316 = vpop.f32.mrf.mxu0
    %v1317 = vadd.f32 0.0, %v1316
    %v1318 = vpop.f32.mrf.mxu0
    %v1319 = vadd.f32 0.0, %v1318
    %1320 = vmatprep.mubr.f32.mxu0 0.0
    %1321 = vmatmul.mubr.f32.gmra.mxu0 %v55
    %v1322 = vpop.f32.mrf.mxu0
    %v1323 = vadd.f32 0.0, %v1322
    %v1324 = vpop.f32.mrf.mxu0
    %v1325 = vadd.f32 0.0, %v1324
    %1326 = vdwg.mxu0
    %v1327 = vld [vmem:[%s5] sm:$0x1]
    %v1329 = vlaneseq
    %v1330 = vshrl.u32 %v1329, 7
    %v1331 = vsub.s32 0, %v1330
    %v1332 = vrot.slane %v1327, %v1331
    %v1334 = vld [vmem:[%s4] sm:$0xff]
    %v1335 = vld [vmem:[%s4 + $0x8] sm:$0xff]
    %v1336 = vld [vmem:[%s4 + $0x10] sm:$0xff]
    %v1337 = vld [vmem:[%s4 + $0x18] sm:$0xff]
    %v1338 = vld [vmem:[%s4 + $0x20] sm:$0xff]
    %v1339 = vld [vmem:[%s4 + $0x28] sm:$0xff]
    %v1340 = vld [vmem:[%s4 + $0x30] sm:$0xff]
    %v1341 = vld [vmem:[%s4 + $0x38] sm:$0xff]
    %v1342 = vld [vmem:[%s4 + $0x40] sm:$0xff]
    %v1343 = vld [vmem:[%s4 + $0x48] sm:$0xff]
    %v1344 = vld [vmem:[%s4 + $0x50] sm:$0xff]
    %v1345 = vld [vmem:[%s4 + $0x58] sm:$0xff]
    %v1346 = vld [vmem:[%s4 + $0x60] sm:$0xff]
    %v1347 = vld [vmem:[%s4 + $0x68] sm:$0xff]
    %v1348 = vld [vmem:[%s4 + $0x70] sm:$0xff]
    %v1349 = vld [vmem:[%s4 + $0x78] sm:$0xff]
    %v1350 = vld [vmem:[%s4 + $0x80] sm:$0xff]
    %v1351 = vld [vmem:[%s4 + $0x88] sm:$0xff]
    %v1353 = vsel %vm38, %v1194, 0
    %v1356 = vsel %vm38, %v1200, 0
    %v1359 = vsel %vm38, %v1295, 0
    %v1362 = vsel %vm38, %v1301, 0
    %1364 = vmatprep.subr.mxu0 0.0
    %1365 = vmatpush1.msra.mxu0 %v1349
    %1366 = vmatprep.subr.mxu0 0.0
    %1367 = vmatpush1.msra.mxu0 %v1348
    %1368 = vmatprep.subr.mxu0 0.0
    %1369 = vmatpush1.msra.mxu0 %v1347
    %1370 = vmatprep.subr.mxu0 0.0
    %1371 = vmatpush1.msra.mxu0 %v1346
    %1372 = vmatprep.subr.mxu0 0.0
    %1373 = vmatpush1.msra.mxu0 %v1345
    %1374 = vmatprep.subr.mxu0 0.0
    %1375 = vmatpush1.msra.mxu0 %v1344
    %1376 = vmatprep.subr.mxu0 0.0
    %1377 = vmatpush1.msra.mxu0 %v1343
    %1378 = vmatprep.subr.mxu0 0.0
    %1379 = vmatpush1.msra.mxu0 %v1342
    %1380 = vmatprep.subr.mxu0 0.0
    %1381 = vmatpush1.msra.mxu0 %v1341
    %1382 = vmatprep.subr.mxu0 0.0
    %1383 = vmatpush1.msra.mxu0 %v1340
    %1384 = vmatprep.subr.mxu0 0.0
    %1385 = vmatpush1.msra.mxu0 %v1339
    %1386 = vmatprep.subr.mxu0 0.0
    %1387 = vmatpush1.msra.mxu0 %v1338
    %1388 = vmatprep.subr.mxu0 0.0
    %1389 = vmatpush1.msra.mxu0 %v1337
    %1390 = vmatprep.subr.mxu0 0.0
    %1391 = vmatpush1.msra.mxu0 %v1336
    %1392 = vmatprep.subr.mxu0 0.0
    %1393 = vmatpush1.msra.mxu0 %v1335
    %1394 = vmatprep.subr.mxu0 0.0
    %1395 = vmatpush1.msra.mxu0 %v1334
    %1396 = vmatprep.subr.mxu0 0.0
    %1397 = vmatpush2.msra.mxu0 0.0
    %1398 = vmatprep.subr.mxu0 0.0
    %1399 = vmatpush2.msra.mxu0 0.0
    %1400 = vmatprep.subr.mxu0 0.0
    %1401 = vmatpush2.msra.mxu0 0.0
    %1402 = vmatprep.subr.mxu0 0.0
    %1403 = vmatpush2.msra.mxu0 0.0
    %1404 = vmatprep.subr.mxu0 0.0
    %1405 = vmatpush2.msra.mxu0 0.0
    %1406 = vmatprep.subr.mxu0 0.0
    %1407 = vmatpush2.msra.mxu0 0.0
    %1408 = vmatprep.subr.mxu0 0.0
    %1409 = vmatpush2.msra.mxu0 0.0
    %1410 = vmatprep.subr.mxu0 0.0
    %1411 = vmatpush2.msra.mxu0 0.0
    %1412 = vmatprep.subr.mxu0 0.0
    %1413 = vmatpush2.msra.mxu0 0.0
    %1414 = vmatprep.subr.mxu0 0.0
    %1415 = vmatpush2.msra.mxu0 0.0
    %1416 = vmatprep.subr.mxu0 0.0
    %1417 = vmatpush2.msra.mxu0 0.0
    %1418 = vmatprep.subr.mxu0 0.0
    %1419 = vmatpush2.msra.mxu0 0.0
    %1420 = vmatprep.subr.mxu0 0.0
    %1421 = vmatpush2.msra.mxu0 0.0
    %1422 = vmatprep.subr.mxu0 0.0
    %1423 = vmatpush2.msra.mxu0 0.0
    %1424 = vmatprep.subr.mxu0 0.0
    %1425 = vmatpush2.msra.mxu0 %v1351
    %1426 = vmatprep.subr.mxu0 0.0
    %1427 = vmatpush2.msra.mxu0 %v1350
    %1428 = vmatprep.mubr.f32.mxu0 %v1353
    %1429 = vmatmul.mubr.f32.gmra.mxu0 %v1192
    %v1430 = vpop.f32.mrf.mxu0
    %v1431 = vadd.f32 0.0, %v1430
    %v1432 = vpop.f32.mrf.mxu0
    %1433 = vmatprep.mubr.f32.mxu0 %v1356
    %1434 = vmatmul.mubr.f32.gmra.mxu0 %v1198
    %v1435 = vpop.f32.mrf.mxu0
    %v1436 = vadd.f32 0.0, %v1435
    %v1437 = vpop.f32.mrf.mxu0
    %1438 = vmatprep.mubr.f32.mxu0 %v1359
    %1439 = vmatmul.mubr.f32.gmra.mxu0 %v1293
    %v1440 = vpop.f32.mrf.mxu0
    %v1441 = vadd.f32 0.0, %v1440
    %v1442 = vpop.f32.mrf.mxu0
    %1443 = vmatprep.mubr.f32.mxu0 %v1362
    %1444 = vmatmul.mubr.f32.gmra.mxu0 %v1299
    %v1445 = vpop.f32.mrf.mxu0
    %v1446 = vadd.f32 0.0, %v1445
    %v1447 = vpop.f32.mrf.mxu0
    %1448 = vdwg.mxu0
    %v1449 = vadd.f32 %v1332, %v1431
    %v1450 = vadd.f32 %v1332, %v1436
    %v1451 = vadd.f32 %v1332, %v1441
    %v1452 = vadd.f32 %v1332, %v1446
    %v1453 = vld [vmem:[%s4 + $0x90] sm:$0xff]
    %v1454 = vld [vmem:[%s4 + $0x98] sm:$0xff]
    %v1455 = vld [vmem:[%s4 + $0xa0] sm:$0xff]
    %v1456 = vld [vmem:[%s4 + $0xa8] sm:$0xff]
    %v1457 = vld [vmem:[%s4 + $0xb0] sm:$0xff]
    %v1458 = vld [vmem:[%s4 + $0xb8] sm:$0xff]
    %v1459 = vld [vmem:[%s4 + $0xc0] sm:$0xff]
    %v1460 = vld [vmem:[%s4 + $0xc8] sm:$0xff]
    %v1461 = vld [vmem:[%s4 + $0xd0] sm:$0xff]
    %v1462 = vld [vmem:[%s4 + $0xd8] sm:$0xff]
    %v1463 = vld [vmem:[%s4 + $0xe0] sm:$0xff]
    %v1464 = vld [vmem:[%s4 + $0xe8] sm:$0xff]
    %v1465 = vld [vmem:[%s4 + $0xf0] sm:$0xff]
    %v1466 = vld [vmem:[%s4 + $0xf8] sm:$0xff]
    %v1467 = vld [vmem:[%s4 + $0x100] sm:$0xff]
    %v1468 = vld [vmem:[%s4 + $0x108] sm:$0xff]
    %v1469 = vld [vmem:[%s4 + $0x110] sm:$0xff]
    %v1470 = vld [vmem:[%s4 + $0x118] sm:$0xff]
    %v1472 = vsel %vm38, %v1206, 0
    %v1475 = vsel %vm38, %v1212, 0
    %v1478 = vsel %vm38, %v1307, 0
    %v1481 = vsel %vm38, %v1313, 0
    %1483 = vmatprep.subr.mxu0 0.0
    %1484 = vmatpush1.msra.mxu0 %v1468
    %1485 = vmatprep.subr.mxu0 0.0
    %1486 = vmatpush1.msra.mxu0 %v1467
    %1487 = vmatprep.subr.mxu0 0.0
    %1488 = vmatpush1.msra.mxu0 %v1466
    %1489 = vmatprep.subr.mxu0 0.0
    %1490 = vmatpush1.msra.mxu0 %v1465
    %1491 = vmatprep.subr.mxu0 0.0
    %1492 = vmatpush1.msra.mxu0 %v1464
    %1493 = vmatprep.subr.mxu0 0.0
    %1494 = vmatpush1.msra.mxu0 %v1463
    %1495 = vmatprep.subr.mxu0 0.0
    %1496 = vmatpush1.msra.mxu0 %v1462
    %1497 = vmatprep.subr.mxu0 0.0
    %1498 = vmatpush1.msra.mxu0 %v1461
    %1499 = vmatprep.subr.mxu0 0.0
    %1500 = vmatpush1.msra.mxu0 %v1460
    %1501 = vmatprep.subr.mxu0 0.0
    %1502 = vmatpush1.msra.mxu0 %v1459
    %1503 = vmatprep.subr.mxu0 0.0
    %1504 = vmatpush1.msra.mxu0 %v1458
    %1505 = vmatprep.subr.mxu0 0.0
    %1506 = vmatpush1.msra.mxu0 %v1457
    %1507 = vmatprep.subr.mxu0 0.0
    %1508 = vmatpush1.msra.mxu0 %v1456
    %1509 = vmatprep.subr.mxu0 0.0
    %1510 = vmatpush1.msra.mxu0 %v1455
    %1511 = vmatprep.subr.mxu0 0.0
    %1512 = vmatpush1.msra.mxu0 %v1454
    %1513 = vmatprep.subr.mxu0 0.0
    %1514 = vmatpush1.msra.mxu0 %v1453
    %1515 = vmatprep.subr.mxu0 0.0
    %1516 = vmatpush2.msra.mxu0 0.0
    %1517 = vmatprep.subr.mxu0 0.0
    %1518 = vmatpush2.msra.mxu0 0.0
    %1519 = vmatprep.subr.mxu0 0.0
    %1520 = vmatpush2.msra.mxu0 0.0
    %1521 = vmatprep.subr.mxu0 0.0
    %1522 = vmatpush2.msra.mxu0 0.0
    %1523 = vmatprep.subr.mxu0 0.0
    %1524 = vmatpush2.msra.mxu0 0.0
    %1525 = vmatprep.subr.mxu0 0.0
    %1526 = vmatpush2.msra.mxu0 0.0
    %1527 = vmatprep.subr.mxu0 0.0
    %1528 = vmatpush2.msra.mxu0 0.0
    %1529 = vmatprep.subr.mxu0 0.0
    %1530 = vmatpush2.msra.mxu0 0.0
    %1531 = vmatprep.subr.mxu0 0.0
    %1532 = vmatpush2.msra.mxu0 0.0
    %1533 = vmatprep.subr.mxu0 0.0
    %1534 = vmatpush2.msra.mxu0 0.0
    %1535 = vmatprep.subr.mxu0 0.0
    %1536 = vmatpush2.msra.mxu0 0.0
    %1537 = vmatprep.subr.mxu0 0.0
    %1538 = vmatpush2.msra.mxu0 0.0
    %1539 = vmatprep.subr.mxu0 0.0
    %1540 = vmatpush2.msra.mxu0 0.0
    %1541 = vmatprep.subr.mxu0 0.0
    %1542 = vmatpush2.msra.mxu0 0.0
    %1543 = vmatprep.subr.mxu0 0.0
    %1544 = vmatpush2.msra.mxu0 %v1470
    %1545 = vmatprep.subr.mxu0 0.0
    %1546 = vmatpush2.msra.mxu0 %v1469
    %1547 = vmatprep.mubr.f32.mxu0 %v1472
    %1548 = vmatmul.mubr.f32.gmra.mxu0 %v1204
    %v1549 = vpop.f32.mrf.mxu0
    %v1550 = vadd.f32 0.0, %v1549
    %v1551 = vpop.f32.mrf.mxu0
    %1552 = vmatprep.mubr.f32.mxu0 %v1475
    %1553 = vmatmul.mubr.f32.gmra.mxu0 %v1210
    %v1554 = vpop.f32.mrf.mxu0
    %v1555 = vadd.f32 0.0, %v1554
    %v1556 = vpop.f32.mrf.mxu0
    %1557 = vmatprep.mubr.f32.mxu0 %v1478
    %1558 = vmatmul.mubr.f32.gmra.mxu0 %v1305
    %v1559 = vpop.f32.mrf.mxu0
    %v1560 = vadd.f32 0.0, %v1559
    %v1561 = vpop.f32.mrf.mxu0
    %1562 = vmatprep.mubr.f32.mxu0 %v1481
    %1563 = vmatmul.mubr.f32.gmra.mxu0 %v1311
    %v1564 = vpop.f32.mrf.mxu0
    %v1565 = vadd.f32 0.0, %v1564
    %v1566 = vpop.f32.mrf.mxu0
    %1567 = vdwg.mxu0
    %v1568 = vadd.f32 %v1449, %v1550
    %v1569 = vadd.f32 %v1450, %v1555
    %v1570 = vadd.f32 %v1451, %v1560
    %v1571 = vadd.f32 %v1452, %v1565
    %v1572 = vld [vmem:[%s4 + $0x120] sm:$0xff]
    %v1573 = vld [vmem:[%s4 + $0x128] sm:$0xff]
    %v1574 = vld [vmem:[%s4 + $0x130] sm:$0xff]
    %v1575 = vld [vmem:[%s4 + $0x138] sm:$0xff]
    %v1576 = vld [vmem:[%s4 + $0x140] sm:$0xff]
    %v1577 = vld [vmem:[%s4 + $0x148] sm:$0xff]
    %v1578 = vld [vmem:[%s4 + $0x150] sm:$0xff]
    %v1579 = vld [vmem:[%s4 + $0x158] sm:$0xff]
    %v1580 = vld [vmem:[%s4 + $0x160] sm:$0xff]
    %v1581 = vld [vmem:[%s4 + $0x168] sm:$0xff]
    %v1582 = vld [vmem:[%s4 + $0x170] sm:$0xff]
    %v1583 = vld [vmem:[%s4 + $0x178] sm:$0xff]
    %v1584 = vld [vmem:[%s4 + $0x180] sm:$0xff]
    %v1585 = vld [vmem:[%s4 + $0x188] sm:$0xff]
    %v1586 = vld [vmem:[%s4 + $0x190] sm:$0xff]
    %v1587 = vld [vmem:[%s4 + $0x198] sm:$0xff]
    %v1588 = vld [vmem:[%s4 + $0x1a0] sm:$0xff]
    %v1589 = vld [vmem:[%s4 + $0x1a8] sm:$0xff]
    %v1591 = vsel %vm38, %v1218, 0
    %v1594 = vsel %vm38, %v1224, 0
    %v1597 = vsel %vm38, %v1319, 0
    %v1600 = vsel %vm38, %v1325, 0
    %1602 = vmatprep.subr.mxu0 0.0
    %1603 = vmatpush1.msra.mxu0 %v1587
    %1604 = vmatprep.subr.mxu0 0.0
    %1605 = vmatpush1.msra.mxu0 %v1586
    %1606 = vmatprep.subr.mxu0 0.0
    %1607 = vmatpush1.msra.mxu0 %v1585
    %1608 = vmatprep.subr.mxu0 0.0
    %1609 = vmatpush1.msra.mxu0 %v1584
    %1610 = vmatprep.subr.mxu0 0.0
    %1611 = vmatpush1.msra.mxu0 %v1583
    %1612 = vmatprep.subr.mxu0 0.0
    %1613 = vmatpush1.msra.mxu0 %v1582
    %1614 = vmatprep.subr.mxu0 0.0
    %1615 = vmatpush1.msra.mxu0 %v1581
    %1616 = vmatprep.subr.mxu0 0.0
    %1617 = vmatpush1.msra.mxu0 %v1580
    %1618 = vmatprep.subr.mxu0 0.0
    %1619 = vmatpush1.msra.mxu0 %v1579
    %1620 = vmatprep.subr.mxu0 0.0
    %1621 = vmatpush1.msra.mxu0 %v1578
    %1622 = vmatprep.subr.mxu0 0.0
    %1623 = vmatpush1.msra.mxu0 %v1577
    %1624 = vmatprep.subr.mxu0 0.0
    %1625 = vmatpush1.msra.mxu0 %v1576
    %1626 = vmatprep.subr.mxu0 0.0
    %1627 = vmatpush1.msra.mxu0 %v1575
    %1628 = vmatprep.subr.mxu0 0.0
    %1629 = vmatpush1.msra.mxu0 %v1574
    %1630 = vmatprep.subr.mxu0 0.0
    %1631 = vmatpush1.msra.mxu0 %v1573
    %1632 = vmatprep.subr.mxu0 0.0
    %1633 = vmatpush1.msra.mxu0 %v1572
    %1634 = vmatprep.subr.mxu0 0.0
    %1635 = vmatpush2.msra.mxu0 0.0
    %1636 = vmatprep.subr.mxu0 0.0
    %1637 = vmatpush2.msra.mxu0 0.0
    %1638 = vmatprep.subr.mxu0 0.0
    %1639 = vmatpush2.msra.mxu0 0.0
    %1640 = vmatprep.subr.mxu0 0.0
    %1641 = vmatpush2.msra.mxu0 0.0
    %1642 = vmatprep.subr.mxu0 0.0
    %1643 = vmatpush2.msra.mxu0 0.0
    %1644 = vmatprep.subr.mxu0 0.0
    %1645 = vmatpush2.msra.mxu0 0.0
    %1646 = vmatprep.subr.mxu0 0.0
    %1647 = vmatpush2.msra.mxu0 0.0
    %1648 = vmatprep.subr.mxu0 0.0
    %1649 = vmatpush2.msra.mxu0 0.0
    %1650 = vmatprep.subr.mxu0 0.0
    %1651 = vmatpush2.msra.mxu0 0.0
    %1652 = vmatprep.subr.mxu0 0.0
    %1653 = vmatpush2.msra.mxu0 0.0
    %1654 = vmatprep.subr.mxu0 0.0
    %1655 = vmatpush2.msra.mxu0 0.0
    %1656 = vmatprep.subr.mxu0 0.0
    %1657 = vmatpush2.msra.mxu0 0.0
    %1658 = vmatprep.subr.mxu0 0.0
    %1659 = vmatpush2.msra.mxu0 0.0
    %1660 = vmatprep.subr.mxu0 0.0
    %1661 = vmatpush2.msra.mxu0 0.0
    %1662 = vmatprep.subr.mxu0 0.0
    %1663 = vmatpush2.msra.mxu0 %v1589
    %1664 = vmatprep.subr.mxu0 0.0
    %1665 = vmatpush2.msra.mxu0 %v1588
    %1666 = vmatprep.mubr.f32.mxu0 %v1591
    %1667 = vmatmul.mubr.f32.gmra.mxu0 %v1216
    %v1668 = vpop.f32.mrf.mxu0
    %v1669 = vadd.f32 0.0, %v1668
    %v1670 = vpop.f32.mrf.mxu0
    %1671 = vmatprep.mubr.f32.mxu0 %v1594
    %1672 = vmatmul.mubr.f32.gmra.mxu0 %v1222
    %v1673 = vpop.f32.mrf.mxu0
    %v1674 = vadd.f32 0.0, %v1673
    %v1675 = vpop.f32.mrf.mxu0
    %1676 = vmatprep.mubr.f32.mxu0 %v1597
    %1677 = vmatmul.mubr.f32.gmra.mxu0 %v1317
    %v1678 = vpop.f32.mrf.mxu0
    %v1679 = vadd.f32 0.0, %v1678
    %v1680 = vpop.f32.mrf.mxu0
    %1681 = vmatprep.mubr.f32.mxu0 %v1600
    %1682 = vmatmul.mubr.f32.gmra.mxu0 %v1323
    %v1683 = vpop.f32.mrf.mxu0
    %v1684 = vadd.f32 0.0, %v1683
    %v1685 = vpop.f32.mrf.mxu0
    %1686 = vdwg.mxu0
    %v1687 = vadd.f32 %v1568, %v1669
    %v1688 = vadd.f32 %v1569, %v1674
    %v1689 = vadd.f32 %v1570, %v1679
    %v1690 = vadd.f32 %v1571, %v1684
    %v1691 = vtanh.pop %v1687
    %v1692 = vtanh.pop %v1688
    %v1693 = vtanh.pop %v1689
    %v1694 = vtanh.pop %v1690
    %v1695 = vmul.f32 %v1049, %v1691
    %v1696 = vmul.f32 %v1051, %v1692
    %v1697 = vmul.f32 %v1053, %v1693
    %v1698 = vmul.f32 %v1055, %v1694
    %v1699 = vsub.f32 1.0, %v1049
    %v1700 = vsub.f32 1.0, %v1051
    %v1701 = vsub.f32 1.0, %v1053
    %v1702 = vsub.f32 1.0, %v1055
    %v1703 = vmul.f32 %v1699, %v30
    %v1704 = vmul.f32 %v1700, %v32
    %v1705 = vmul.f32 %v1701, %v34
    %v1706 = vmul.f32 %v1702, %v36
    %v1707 = vadd.f32 %v1695, %v1703
    %v1708 = vadd.f32 %v1696, %v1704
    %v1709 = vadd.f32 %v1697, %v1705
    %v1710 = vadd.f32 %v1698, %v1706
    %1711 = vst [vmem:[#allocation2] sm:$0xff] %v1707
    %1712 = vst [vmem:[#allocation2 + $0x8] sm:$0xff] %v1708
    %1713 = vst [vmem:[#allocation2 + $0x10] sm:$0xff] %v1709
    %1714 = vst [vmem:[#allocation2 + $0x18] sm:$0xff] %v1710
    // Predicated region
    $region26: #{tpu_custom_call.1} parent=1 // pred_check
      _
    $region27: #{tpu_custom_call.1} parent=1 // pred_check_branch
      %1716 = sbr.rel (0) target = $region29
    $region28: #{tpu_custom_call.1} parent=1 // pred_region
      %s1718 = ssub.s32 512, 512
      %1719 = vsyncadd [#allocation3], %s1718
      %s1720 = sshll.u32 [#allocation2], 4
      %s1721 = int_to_ptr.vmem [resolvable:$true] %s1720
      %1726 = dma.vmem_to_hbm [thread:$0]  %s1721, 512, %s6, [#allocation3], 128, 128, 8
    $region29: #{tpu_custom_call.1} parent=1 // pred_fallthru
      _
    // Predicated region
    $region30: #{tpu_custom_call.1} parent=1 // pred_check
      _
    $region31: #{tpu_custom_call.1} parent=1 // pred_check_branch
      %1728 = sbr.rel (0) target = $region33
    $region32: #{tpu_custom_call.1} parent=1 // pred_region
      %1729 = dma.done [#allocation3], 512
    $region33: #{tpu_custom_call.1} parent=1 // pred_fallthru
      _
    %1730 = vsyncpa [#allocation3], 1

</llo_original>
